<compile_context>
chip_gen: v5e
topology: v5e:2x2
jax: 0.10.0
libtpu: 0.0.40
codegen_flags: <defaults>
</compile_context>

<pallas_src>
import functools

import jax
import jax.numpy as jnp
from jax import lax
from jax.experimental import pallas as pl
from jax.experimental.pallas import tpu as pltpu


# ----------------------------------------------------------------------------
# Fused Pallas kernel: whole batch in one grid step.
# Layout: channels on sublanes, flattened H*W on lanes; images stacked on sublanes.
# ----------------------------------------------------------------------------
def _fused_block_kernel(x_ref, m_ref, w1_ref, b1_ref, w2_ref, b2_ref,
                        w3_ref, wsc_ref, bf_ref, o_ref,
                        *, N, H, W, Cin, Cmid, Cout):
    HW = H * W
    x = x_ref[...]        # (N*Cin, HW)   activations, lane-dense
    masks = m_ref[...]    # (9, HW)       precomputed 0/1 boundary masks per 3x3 tap
    w1 = w1_ref[...]      # (Cmid, Cin)   BN-folded 1x1 weights
    b1 = b1_ref[...]      # (Cmid, 1)
    w2 = w2_ref[...]      # (Cmid, 9*Cmid)  [co, t*Cmid + ci], BN-folded 3x3 weights
    b2 = b2_ref[...]      # (Cmid, 1)
    w3 = w3_ref[...]      # (Cout, Cmid)  BN-folded final 1x1 weights
    wsc = wsc_ref[...]    # (Cout, Cin)   BN-folded shortcut 1x1 weights
    bf = bf_ref[...]      # (Cout, 1)     combined main+shortcut bias

    for n in range(N):                                   # N=2: short static loop
        xs = x[n * Cin:(n + 1) * Cin, :]                 # (Cin, HW)

        # ---- stage 1: 1x1 conv (BN folded) + ReLU --------------------------
        acc1 = None
        for ci in range(Cin):
            term = w1[:, ci:ci + 1] * xs[ci:ci + 1, :]   # (Cmid,1)*(1,HW) -> (Cmid,HW)
            acc1 = term if acc1 is None else acc1 + term
        h1 = jnp.maximum(acc1 + b1, 0.0)                 # (Cmid, HW)

        # ---- stage 2: 3x3 conv, stride 1, pad 1 (BN folded) + ReLU ----------
        # Taps via lane rolls on the flattened spatial axis; zero-padding / image
        # edges handled by the host-precomputed (1,HW) masks.
        acc2 = None
        t = 0
        for dy in (-1, 0, 1):
            for dx in (-1, 0, 1):
                off = dy * W + dx
                if off == 0:
                    tap = h1
                else:
                    tap = (pltpu.roll(h1, shift=(-off) % HW, axis=1)
                           * masks[t:t + 1, :])          # (Cmid, HW)
                base = t * Cmid
                for ci in range(Cmid):
                    term = w2[:, base + ci:base + ci + 1] * tap[ci:ci + 1, :]
                    acc2 = term if acc2 is None else acc2 + term
                t += 1
        h2 = jnp.maximum(acc2 + b2, 0.0)                 # (Cmid, HW)

        # ---- stage 3: merged (final 1x1 + BN) + (shortcut 1x1 + BN) + ReLU --
        acc3 = None
        for ci in range(Cmid):
            term = w3[:, ci:ci + 1] * h2[ci:ci + 1, :]   # (Cout,1)*(1,HW) -> (Cout,HW)
            acc3 = term if acc3 is None else acc3 + term
        for ci in range(Cin):
            acc3 = acc3 + wsc[:, ci:ci + 1] * xs[ci:ci + 1, :]
        # single lane-dense, sublane-aligned slab store per image
        o_ref[n * Cout:(n + 1) * Cout, :] = jnp.maximum(acc3 + bf, 0.0)


# ----------------------------------------------------------------------------
# Host-side helpers: BN folding, weight-column layout, tap boundary masks
# ----------------------------------------------------------------------------
def fold_params(p):
    Cin, Cmid = p["w1"].shape
    Cout = p["w3"].shape[1]
    w1k = (p["w1"] * p["s1"]).T                                   # (Cmid, Cin)
    b1k = p["b1"].reshape(Cmid, 1)
    w2s = p["w2_hwio"] * p["s2"].reshape(1, 1, 1, Cmid)           # (3,3,Cmid,Cmid)
    w2k = w2s.transpose(3, 0, 1, 2).reshape(Cmid, 9 * Cmid)       # [co, t*Cmid + ci]
    b2k = p["b2"].reshape(Cmid, 1)
    w3k = (p["w3"] * p["s3"]).T                                   # (Cout, Cmid)
    wsck = (p["wsc"] * p["ssc"]).T                                # (Cout, Cin)
    bfk = (p["b3"] + p["bsc"]).reshape(Cout, 1)                   # combined bias
    return w1k, b1k, w2k, b2k, w3k, wsck, bfk


def build_tap_masks(H, W):
    p = jnp.arange(H * W, dtype=jnp.int32)
    row = p // W
    col = p % W
    rows = []
    for dy in (-1, 0, 1):
        for dx in (-1, 0, 1):
            valid = ((row + dy >= 0) & (row + dy < H) &
                     (col + dx >= 0) & (col + dx < W))
            rows.append(valid.astype(jnp.float32))
    return jnp.stack(rows, axis=0)                                # (9, H*W)


# ----------------------------------------------------------------------------
# Forward pass: one fused pallas_call, whole batch in a single grid step
# ----------------------------------------------------------------------------
def residual_bottleneck_forward(x_nchw, params):
    N, Cin, H, W = x_nchw.shape
    HW = H * W
    Cmid = params["w1"].shape[1]
    Cout = params["w3"].shape[1]
    w1k, b1k, w2k, b2k, w3k, wsck, bfk = fold_params(params)
    masks = build_tap_masks(H, W)

    x2 = x_nchw.reshape(N * Cin, HW)            # free reshape (row-major NCHW order)

    def full(shape):
        return pl.BlockSpec(shape, lambda i: (0, 0))

    out2 = pl.pallas_call(
        functools.partial(_fused_block_kernel, N=N, H=H, W=W,
                          Cin=Cin, Cmid=Cmid, Cout=Cout),
        out_shape=jax.ShapeDtypeStruct((N * Cout, HW), jnp.float32),
        grid=(1,),
        in_specs=[
            full((N * Cin, HW)),       # x
            full((9, HW)),             # tap masks
            full((Cmid, Cin)),         # w1
            full((Cmid, 1)),           # b1
            full((Cmid, 9 * Cmid)),    # w2
            full((Cmid, 1)),           # b2
            full((Cout, Cmid)),        # w3
            full((Cout, Cin)),         # wsc
            full((Cout, 1)),           # bf
        ],
        out_specs=full((N * Cout, HW)),
        compiler_params=pltpu.CompilerParams(dimension_semantics=("arbitrary",)),
    )(x2, masks, w1k, b1k, w2k, b2k, w3k, wsck, bfk)

    return out2.reshape(N, Cout, H, W)          # free reshape back to NCHW


# ----------------------------------------------------------------------------
# Deterministic parameter construction (synthetic, inference-mode BN)
# ----------------------------------------------------------------------------
def make_params(key, Cin, Cout):
    Cmid = Cout // 4
    eps = 1e-5
    ks = jax.random.split(key, 20)

    def bn_fold(kg, kb, km, kv, C):
        gamma = jax.random.uniform(kg, (C,), jnp.float32, 0.5, 1.5)
        beta = jax.random.normal(kb, (C,), jnp.float32) * 0.1
        mean = jax.random.normal(km, (C,), jnp.float32) * 0.1
        var = jax.random.uniform(kv, (C,), jnp.float32, 0.5, 1.5)
        scale = gamma / jnp.sqrt(var + eps)
        shift = beta - mean * scale
        return scale.reshape(1, C), shift.reshape(1, C)

    w1 = jax.random.normal(ks[0], (Cin, Cmid), jnp.float32) * 0.2
    w2_hwio = jax.random.normal(ks[1], (3, 3, Cmid, Cmid), jnp.float32) * 0.2
    w3 = jax.random.normal(ks[2], (Cmid, Cout), jnp.float32) * 0.2
    wsc = jax.random.normal(ks[3], (Cin, Cout), jnp.float32) * 0.2

    s1, b1 = bn_fold(ks[4], ks[5], ks[6], ks[7], Cmid)
    s2, b2 = bn_fold(ks[8], ks[9], ks[10], ks[11], Cmid)
    s3, b3 = bn_fold(ks[12], ks[13], ks[14], ks[15], Cout)
    ssc, bsc = bn_fold(ks[16], ks[17], ks[18], ks[19], Cout)

    return {
        "w1": w1, "s1": s1, "b1": b1,
        "w2_hwio": w2_hwio, "s2": s2, "b2": b2,
        "w3": w3, "s3": s3, "b3": b3,
        "wsc": wsc, "ssc": ssc, "bsc": bsc,
    }


# ----------------------------------------------------------------------------
# Pure-JAX reference (independent path via lax.conv) for correctness check
# ----------------------------------------------------------------------------
def reference_forward(x_nchw, p):
    hi = lax.Precision.HIGHEST
    x = jnp.transpose(x_nchw, (0, 2, 3, 1))  # NHWC
    h = jnp.maximum(
        jnp.einsum("nhwc,cd->nhwd", x, p["w1"], precision=hi) * p["s1"] + p["b1"], 0.0)
    h = lax.conv_general_dilated(h, p["w2_hwio"], (1, 1), "SAME",
                                 dimension_numbers=("NHWC", "HWIO", "NHWC"),
                                 precision=hi)
    h = jnp.maximum(h * p["s2"] + p["b2"], 0.0)
    h = jnp.einsum("nhwc,cd->nhwd", h, p["w3"], precision=hi) * p["s3"] + p["b3"]
    sc = jnp.einsum("nhwc,cd->nhwd", x, p["wsc"], precision=hi) * p["ssc"] + p["bsc"]
    out = jnp.maximum(h + sc, 0.0)
    return jnp.transpose(out, (0, 3, 1, 2))


# ----------------------------------------------------------------------------
if __name__ == "__main__":
    N, Cin, H, W = 2, 4, 16, 16
    Cout = 16

    key = jax.random.PRNGKey(0)
    kx, kp = jax.random.split(key)
    x = jax.random.normal(kx, (N, Cin, H, W), jnp.float32)
    params = make_params(kp, Cin, Cout)

    out = jax.block_until_ready(residual_bottleneck_forward(x, params))
    ref = jax.block_until_ready(reference_forward(x, params))

    assert out.shape == (N, Cout, H, W), out.shape
    assert jnp.allclose(out, ref, atol=1e-4, rtol=1e-4), float(jnp.max(jnp.abs(out - ref)))

    print("KERNEL_OK")
</pallas_src>

<mosaic_0001>
module attributes {stable_mosaic.version = 11 : i64} {
  func.func @_fused_block_kernel(%arg0: i32, %arg1: memref<8x256xf32, #tpu.memory_space<vmem>>, %arg2: memref<9x256xf32, #tpu.memory_space<vmem>>, %arg3: memref<4x4xf32, #tpu.memory_space<vmem>>, %arg4: memref<4x1xf32, #tpu.memory_space<vmem>>, %arg5: memref<4x36xf32, #tpu.memory_space<vmem>>, %arg6: memref<4x1xf32, #tpu.memory_space<vmem>>, %arg7: memref<16x4xf32, #tpu.memory_space<vmem>>, %arg8: memref<16x4xf32, #tpu.memory_space<vmem>>, %arg9: memref<16x1xf32, #tpu.memory_space<vmem>>, %arg10: memref<32x256xf32, #tpu.memory_space<vmem>>) attributes {dimension_semantics = [#tpu.dimension_semantics<arbitrary>], iteration_bounds = array<i64: 1>, scalar_prefetch = 0 : i64, scratch_operands = 0 : i64, tpu.core_type = #tpu.core_type<tc>, window_params = [{pipeline_mode = #tpu.pipeline_mode<synchronous>, transform_indices = @transform_0, window_bounds = array<i64: 8, 256>}, {pipeline_mode = #tpu.pipeline_mode<synchronous>, transform_indices = @transform_1, window_bounds = array<i64: 9, 256>}, {pipeline_mode = #tpu.pipeline_mode<synchronous>, transform_indices = @transform_2, window_bounds = array<i64: 4, 4>}, {pipeline_mode = #tpu.pipeline_mode<synchronous>, transform_indices = @transform_3, window_bounds = array<i64: 4, 1>}, {pipeline_mode = #tpu.pipeline_mode<synchronous>, transform_indices = @transform_4, window_bounds = array<i64: 4, 36>}, {pipeline_mode = #tpu.pipeline_mode<synchronous>, transform_indices = @transform_5, window_bounds = array<i64: 4, 1>}, {pipeline_mode = #tpu.pipeline_mode<synchronous>, transform_indices = @transform_6, window_bounds = array<i64: 16, 4>}, {pipeline_mode = #tpu.pipeline_mode<synchronous>, transform_indices = @transform_7, window_bounds = array<i64: 16, 4>}, {pipeline_mode = #tpu.pipeline_mode<synchronous>, transform_indices = @transform_8, window_bounds = array<i64: 16, 1>}, {pipeline_mode = #tpu.pipeline_mode<synchronous>, transform_indices = @transform_9, window_bounds = array<i64: 32, 256>}]} {
    %c0 = arith.constant 0 : index
    %c0_0 = arith.constant 0 : index
    %0 = vector.load %arg1[%c0, %c0_0] : memref<8x256xf32, #tpu.memory_space<vmem>>, vector<8x256xf32>
    %c0_1 = arith.constant 0 : index
    %c0_2 = arith.constant 0 : index
    %1 = vector.load %arg2[%c0_1, %c0_2] : memref<9x256xf32, #tpu.memory_space<vmem>>, vector<9x256xf32>
    %c0_3 = arith.constant 0 : index
    %c0_4 = arith.constant 0 : index
    %2 = vector.load %arg3[%c0_3, %c0_4] : memref<4x4xf32, #tpu.memory_space<vmem>>, vector<4x4xf32>
    %c0_5 = arith.constant 0 : index
    %c0_6 = arith.constant 0 : index
    %3 = vector.load %arg4[%c0_5, %c0_6] : memref<4x1xf32, #tpu.memory_space<vmem>>, vector<4x1xf32>
    %c0_7 = arith.constant 0 : index
    %c0_8 = arith.constant 0 : index
    %4 = vector.load %arg5[%c0_7, %c0_8] : memref<4x36xf32, #tpu.memory_space<vmem>>, vector<4x36xf32>
    %c0_9 = arith.constant 0 : index
    %c0_10 = arith.constant 0 : index
    %5 = vector.load %arg6[%c0_9, %c0_10] : memref<4x1xf32, #tpu.memory_space<vmem>>, vector<4x1xf32>
    %c0_11 = arith.constant 0 : index
    %c0_12 = arith.constant 0 : index
    %6 = vector.load %arg7[%c0_11, %c0_12] : memref<16x4xf32, #tpu.memory_space<vmem>>, vector<16x4xf32>
    %c0_13 = arith.constant 0 : index
    %c0_14 = arith.constant 0 : index
    %7 = vector.load %arg8[%c0_13, %c0_14] : memref<16x4xf32, #tpu.memory_space<vmem>>, vector<16x4xf32>
    %c0_15 = arith.constant 0 : index
    %c0_16 = arith.constant 0 : index
    %8 = vector.load %arg9[%c0_15, %c0_16] : memref<16x1xf32, #tpu.memory_space<vmem>>, vector<16x1xf32>
    %9 = vector.extract_strided_slice %0 {offsets = [0, 0], sizes = [4, 256], strides = [1, 1]} : vector<8x256xf32> to vector<4x256xf32>
    %10 = vector.extract_strided_slice %2 {offsets = [0, 0], sizes = [4, 1], strides = [1, 1]} : vector<4x4xf32> to vector<4x1xf32>
    %11 = vector.extract_strided_slice %9 {offsets = [0, 0], sizes = [1, 256], strides = [1, 1]} : vector<4x256xf32> to vector<1x256xf32>
    %12 = vector.broadcast %10 : vector<4x1xf32> to vector<4x256xf32>
    %13 = vector.broadcast %11 : vector<1x256xf32> to vector<4x256xf32>
    %14 = arith.mulf %12, %13 : vector<4x256xf32>
    %15 = vector.extract_strided_slice %2 {offsets = [0, 1], sizes = [4, 1], strides = [1, 1]} : vector<4x4xf32> to vector<4x1xf32>
    %16 = vector.extract_strided_slice %9 {offsets = [1, 0], sizes = [1, 256], strides = [1, 1]} : vector<4x256xf32> to vector<1x256xf32>
    %17 = vector.broadcast %15 : vector<4x1xf32> to vector<4x256xf32>
    %18 = vector.broadcast %16 : vector<1x256xf32> to vector<4x256xf32>
    %19 = arith.mulf %17, %18 : vector<4x256xf32>
    %20 = arith.addf %14, %19 : vector<4x256xf32>
    %21 = vector.extract_strided_slice %2 {offsets = [0, 2], sizes = [4, 1], strides = [1, 1]} : vector<4x4xf32> to vector<4x1xf32>
    %22 = vector.extract_strided_slice %9 {offsets = [2, 0], sizes = [1, 256], strides = [1, 1]} : vector<4x256xf32> to vector<1x256xf32>
    %23 = vector.broadcast %21 : vector<4x1xf32> to vector<4x256xf32>
    %24 = vector.broadcast %22 : vector<1x256xf32> to vector<4x256xf32>
    %25 = arith.mulf %23, %24 : vector<4x256xf32>
    %26 = arith.addf %20, %25 : vector<4x256xf32>
    %27 = vector.extract_strided_slice %2 {offsets = [0, 3], sizes = [4, 1], strides = [1, 1]} : vector<4x4xf32> to vector<4x1xf32>
    %28 = vector.extract_strided_slice %9 {offsets = [3, 0], sizes = [1, 256], strides = [1, 1]} : vector<4x256xf32> to vector<1x256xf32>
    %29 = vector.broadcast %27 : vector<4x1xf32> to vector<4x256xf32>
    %30 = vector.broadcast %28 : vector<1x256xf32> to vector<4x256xf32>
    %31 = arith.mulf %29, %30 : vector<4x256xf32>
    %32 = arith.addf %26, %31 : vector<4x256xf32>
    %33 = vector.broadcast %3 : vector<4x1xf32> to vector<4x256xf32>
    %34 = arith.addf %32, %33 : vector<4x256xf32>
    %cst = arith.constant 0.000000e+00 : f32
    %35 = vector.broadcast %cst : f32 to vector<4x256xf32>
    %36 = arith.maximumf %34, %35 : vector<4x256xf32>
    %c17_i32 = arith.constant 17 : i32
    %37 = tpu.dynamic_rotate %36 by %c17_i32 dim 1 : vector<4x256xf32>, i32 -> vector<4x256xf32>
    %38 = vector.extract_strided_slice %1 {offsets = [0, 0], sizes = [1, 256], strides = [1, 1]} : vector<9x256xf32> to vector<1x256xf32>
    %39 = vector.broadcast %38 : vector<1x256xf32> to vector<4x256xf32>
    %40 = arith.mulf %37, %39 : vector<4x256xf32>
    %41 = vector.extract_strided_slice %4 {offsets = [0, 0], sizes = [4, 1], strides = [1, 1]} : vector<4x36xf32> to vector<4x1xf32>
    %42 = vector.extract_strided_slice %40 {offsets = [0, 0], sizes = [1, 256], strides = [1, 1]} : vector<4x256xf32> to vector<1x256xf32>
    %43 = vector.broadcast %41 : vector<4x1xf32> to vector<4x256xf32>
    %44 = vector.broadcast %42 : vector<1x256xf32> to vector<4x256xf32>
    %45 = arith.mulf %43, %44 : vector<4x256xf32>
    %46 = vector.extract_strided_slice %4 {offsets = [0, 1], sizes = [4, 1], strides = [1, 1]} : vector<4x36xf32> to vector<4x1xf32>
    %47 = vector.extract_strided_slice %40 {offsets = [1, 0], sizes = [1, 256], strides = [1, 1]} : vector<4x256xf32> to vector<1x256xf32>
    %48 = vector.broadcast %46 : vector<4x1xf32> to vector<4x256xf32>
    %49 = vector.broadcast %47 : vector<1x256xf32> to vector<4x256xf32>
    %50 = arith.mulf %48, %49 : vector<4x256xf32>
    %51 = arith.addf %45, %50 : vector<4x256xf32>
    %52 = vector.extract_strided_slice %4 {offsets = [0, 2], sizes = [4, 1], strides = [1, 1]} : vector<4x36xf32> to vector<4x1xf32>
    %53 = vector.extract_strided_slice %40 {offsets = [2, 0], sizes = [1, 256], strides = [1, 1]} : vector<4x256xf32> to vector<1x256xf32>
    %54 = vector.broadcast %52 : vector<4x1xf32> to vector<4x256xf32>
    %55 = vector.broadcast %53 : vector<1x256xf32> to vector<4x256xf32>
    %56 = arith.mulf %54, %55 : vector<4x256xf32>
    %57 = arith.addf %51, %56 : vector<4x256xf32>
    %58 = vector.extract_strided_slice %4 {offsets = [0, 3], sizes = [4, 1], strides = [1, 1]} : vector<4x36xf32> to vector<4x1xf32>
    %59 = vector.extract_strided_slice %40 {offsets = [3, 0], sizes = [1, 256], strides = [1, 1]} : vector<4x256xf32> to vector<1x256xf32>
    %60 = vector.broadcast %58 : vector<4x1xf32> to vector<4x256xf32>
    %61 = vector.broadcast %59 : vector<1x256xf32> to vector<4x256xf32>
    %62 = arith.mulf %60, %61 : vector<4x256xf32>
    %63 = arith.addf %57, %62 : vector<4x256xf32>
    %c16_i32 = arith.constant 16 : i32
    %64 = tpu.dynamic_rotate %36 by %c16_i32 dim 1 : vector<4x256xf32>, i32 -> vector<4x256xf32>
    %65 = vector.extract_strided_slice %1 {offsets = [1, 0], sizes = [1, 256], strides = [1, 1]} : vector<9x256xf32> to vector<1x256xf32>
    %66 = vector.broadcast %65 : vector<1x256xf32> to vector<4x256xf32>
    %67 = arith.mulf %64, %66 : vector<4x256xf32>
    %68 = vector.extract_strided_slice %4 {offsets = [0, 4], sizes = [4, 1], strides = [1, 1]} : vector<4x36xf32> to vector<4x1xf32>
    %69 = vector.extract_strided_slice %67 {offsets = [0, 0], sizes = [1, 256], strides = [1, 1]} : vector<4x256xf32> to vector<1x256xf32>
    %70 = vector.broadcast %68 : vector<4x1xf32> to vector<4x256xf32>
    %71 = vector.broadcast %69 : vector<1x256xf32> to vector<4x256xf32>
    %72 = arith.mulf %70, %71 : vector<4x256xf32>
    %73 = arith.addf %63, %72 : vector<4x256xf32>
    %74 = vector.extract_strided_slice %4 {offsets = [0, 5], sizes = [4, 1], strides = [1, 1]} : vector<4x36xf32> to vector<4x1xf32>
    %75 = vector.extract_strided_slice %67 {offsets = [1, 0], sizes = [1, 256], strides = [1, 1]} : vector<4x256xf32> to vector<1x256xf32>
    %76 = vector.broadcast %74 : vector<4x1xf32> to vector<4x256xf32>
    %77 = vector.broadcast %75 : vector<1x256xf32> to vector<4x256xf32>
    %78 = arith.mulf %76, %77 : vector<4x256xf32>
    %79 = arith.addf %73, %78 : vector<4x256xf32>
    %80 = vector.extract_strided_slice %4 {offsets = [0, 6], sizes = [4, 1], strides = [1, 1]} : vector<4x36xf32> to vector<4x1xf32>
    %81 = vector.extract_strided_slice %67 {offsets = [2, 0], sizes = [1, 256], strides = [1, 1]} : vector<4x256xf32> to vector<1x256xf32>
    %82 = vector.broadcast %80 : vector<4x1xf32> to vector<4x256xf32>
    %83 = vector.broadcast %81 : vector<1x256xf32> to vector<4x256xf32>
    %84 = arith.mulf %82, %83 : vector<4x256xf32>
    %85 = arith.addf %79, %84 : vector<4x256xf32>
    %86 = vector.extract_strided_slice %4 {offsets = [0, 7], sizes = [4, 1], strides = [1, 1]} : vector<4x36xf32> to vector<4x1xf32>
    %87 = vector.extract_strided_slice %67 {offsets = [3, 0], sizes = [1, 256], strides = [1, 1]} : vector<4x256xf32> to vector<1x256xf32>
    %88 = vector.broadcast %86 : vector<4x1xf32> to vector<4x256xf32>
    %89 = vector.broadcast %87 : vector<1x256xf32> to vector<4x256xf32>
    %90 = arith.mulf %88, %89 : vector<4x256xf32>
    %91 = arith.addf %85, %90 : vector<4x256xf32>
    %c15_i32 = arith.constant 15 : i32
    %92 = tpu.dynamic_rotate %36 by %c15_i32 dim 1 : vector<4x256xf32>, i32 -> vector<4x256xf32>
    %93 = vector.extract_strided_slice %1 {offsets = [2, 0], sizes = [1, 256], strides = [1, 1]} : vector<9x256xf32> to vector<1x256xf32>
    %94 = vector.broadcast %93 : vector<1x256xf32> to vector<4x256xf32>
    %95 = arith.mulf %92, %94 : vector<4x256xf32>
    %96 = vector.extract_strided_slice %4 {offsets = [0, 8], sizes = [4, 1], strides = [1, 1]} : vector<4x36xf32> to vector<4x1xf32>
    %97 = vector.extract_strided_slice %95 {offsets = [0, 0], sizes = [1, 256], strides = [1, 1]} : vector<4x256xf32> to vector<1x256xf32>
    %98 = vector.broadcast %96 : vector<4x1xf32> to vector<4x256xf32>
    %99 = vector.broadcast %97 : vector<1x256xf32> to vector<4x256xf32>
    %100 = arith.mulf %98, %99 : vector<4x256xf32>
    %101 = arith.addf %91, %100 : vector<4x256xf32>
    %102 = vector.extract_strided_slice %4 {offsets = [0, 9], sizes = [4, 1], strides = [1, 1]} : vector<4x36xf32> to vector<4x1xf32>
    %103 = vector.extract_strided_slice %95 {offsets = [1, 0], sizes = [1, 256], strides = [1, 1]} : vector<4x256xf32> to vector<1x256xf32>
    %104 = vector.broadcast %102 : vector<4x1xf32> to vector<4x256xf32>
    %105 = vector.broadcast %103 : vector<1x256xf32> to vector<4x256xf32>
    %106 = arith.mulf %104, %105 : vector<4x256xf32>
    %107 = arith.addf %101, %106 : vector<4x256xf32>
    %108 = vector.extract_strided_slice %4 {offsets = [0, 10], sizes = [4, 1], strides = [1, 1]} : vector<4x36xf32> to vector<4x1xf32>
    %109 = vector.extract_strided_slice %95 {offsets = [2, 0], sizes = [1, 256], strides = [1, 1]} : vector<4x256xf32> to vector<1x256xf32>
    %110 = vector.broadcast %108 : vector<4x1xf32> to vector<4x256xf32>
    %111 = vector.broadcast %109 : vector<1x256xf32> to vector<4x256xf32>
    %112 = arith.mulf %110, %111 : vector<4x256xf32>
    %113 = arith.addf %107, %112 : vector<4x256xf32>
    %114 = vector.extract_strided_slice %4 {offsets = [0, 11], sizes = [4, 1], strides = [1, 1]} : vector<4x36xf32> to vector<4x1xf32>
    %115 = vector.extract_strided_slice %95 {offsets = [3, 0], sizes = [1, 256], strides = [1, 1]} : vector<4x256xf32> to vector<1x256xf32>
    %116 = vector.broadcast %114 : vector<4x1xf32> to vector<4x256xf32>
    %117 = vector.broadcast %115 : vector<1x256xf32> to vector<4x256xf32>
    %118 = arith.mulf %116, %117 : vector<4x256xf32>
    %119 = arith.addf %113, %118 : vector<4x256xf32>
    %c1_i32 = arith.constant 1 : i32
    %120 = tpu.dynamic_rotate %36 by %c1_i32 dim 1 : vector<4x256xf32>, i32 -> vector<4x256xf32>
    %121 = vector.extract_strided_slice %1 {offsets = [3, 0], sizes = [1, 256], strides = [1, 1]} : vector<9x256xf32> to vector<1x256xf32>
    %122 = vector.broadcast %121 : vector<1x256xf32> to vector<4x256xf32>
    %123 = arith.mulf %120, %122 : vector<4x256xf32>
    %124 = vector.extract_strided_slice %4 {offsets = [0, 12], sizes = [4, 1], strides = [1, 1]} : vector<4x36xf32> to vector<4x1xf32>
    %125 = vector.extract_strided_slice %123 {offsets = [0, 0], sizes = [1, 256], strides = [1, 1]} : vector<4x256xf32> to vector<1x256xf32>
    %126 = vector.broadcast %124 : vector<4x1xf32> to vector<4x256xf32>
    %127 = vector.broadcast %125 : vector<1x256xf32> to vector<4x256xf32>
    %128 = arith.mulf %126, %127 : vector<4x256xf32>
    %129 = arith.addf %119, %128 : vector<4x256xf32>
    %130 = vector.extract_strided_slice %4 {offsets = [0, 13], sizes = [4, 1], strides = [1, 1]} : vector<4x36xf32> to vector<4x1xf32>
    %131 = vector.extract_strided_slice %123 {offsets = [1, 0], sizes = [1, 256], strides = [1, 1]} : vector<4x256xf32> to vector<1x256xf32>
    %132 = vector.broadcast %130 : vector<4x1xf32> to vector<4x256xf32>
    %133 = vector.broadcast %131 : vector<1x256xf32> to vector<4x256xf32>
    %134 = arith.mulf %132, %133 : vector<4x256xf32>
    %135 = arith.addf %129, %134 : vector<4x256xf32>
    %136 = vector.extract_strided_slice %4 {offsets = [0, 14], sizes = [4, 1], strides = [1, 1]} : vector<4x36xf32> to vector<4x1xf32>
    %137 = vector.extract_strided_slice %123 {offsets = [2, 0], sizes = [1, 256], strides = [1, 1]} : vector<4x256xf32> to vector<1x256xf32>
    %138 = vector.broadcast %136 : vector<4x1xf32> to vector<4x256xf32>
    %139 = vector.broadcast %137 : vector<1x256xf32> to vector<4x256xf32>
    %140 = arith.mulf %138, %139 : vector<4x256xf32>
    %141 = arith.addf %135, %140 : vector<4x256xf32>
    %142 = vector.extract_strided_slice %4 {offsets = [0, 15], sizes = [4, 1], strides = [1, 1]} : vector<4x36xf32> to vector<4x1xf32>
    %143 = vector.extract_strided_slice %123 {offsets = [3, 0], sizes = [1, 256], strides = [1, 1]} : vector<4x256xf32> to vector<1x256xf32>
    %144 = vector.broadcast %142 : vector<4x1xf32> to vector<4x256xf32>
    %145 = vector.broadcast %143 : vector<1x256xf32> to vector<4x256xf32>
    %146 = arith.mulf %144, %145 : vector<4x256xf32>
    %147 = arith.addf %141, %146 : vector<4x256xf32>
    %148 = vector.extract_strided_slice %4 {offsets = [0, 16], sizes = [4, 1], strides = [1, 1]} : vector<4x36xf32> to vector<4x1xf32>
    %149 = vector.extract_strided_slice %36 {offsets = [0, 0], sizes = [1, 256], strides = [1, 1]} : vector<4x256xf32> to vector<1x256xf32>
    %150 = vector.broadcast %148 : vector<4x1xf32> to vector<4x256xf32>
    %151 = vector.broadcast %149 : vector<1x256xf32> to vector<4x256xf32>
    %152 = arith.mulf %150, %151 : vector<4x256xf32>
    %153 = arith.addf %147, %152 : vector<4x256xf32>
    %154 = vector.extract_strided_slice %4 {offsets = [0, 17], sizes = [4, 1], strides = [1, 1]} : vector<4x36xf32> to vector<4x1xf32>
    %155 = vector.extract_strided_slice %36 {offsets = [1, 0], sizes = [1, 256], strides = [1, 1]} : vector<4x256xf32> to vector<1x256xf32>
    %156 = vector.broadcast %154 : vector<4x1xf32> to vector<4x256xf32>
    %157 = vector.broadcast %155 : vector<1x256xf32> to vector<4x256xf32>
    %158 = arith.mulf %156, %157 : vector<4x256xf32>
    %159 = arith.addf %153, %158 : vector<4x256xf32>
    %160 = vector.extract_strided_slice %4 {offsets = [0, 18], sizes = [4, 1], strides = [1, 1]} : vector<4x36xf32> to vector<4x1xf32>
    %161 = vector.extract_strided_slice %36 {offsets = [2, 0], sizes = [1, 256], strides = [1, 1]} : vector<4x256xf32> to vector<1x256xf32>
    %162 = vector.broadcast %160 : vector<4x1xf32> to vector<4x256xf32>
    %163 = vector.broadcast %161 : vector<1x256xf32> to vector<4x256xf32>
    %164 = arith.mulf %162, %163 : vector<4x256xf32>
    %165 = arith.addf %159, %164 : vector<4x256xf32>
    %166 = vector.extract_strided_slice %4 {offsets = [0, 19], sizes = [4, 1], strides = [1, 1]} : vector<4x36xf32> to vector<4x1xf32>
    %167 = vector.extract_strided_slice %36 {offsets = [3, 0], sizes = [1, 256], strides = [1, 1]} : vector<4x256xf32> to vector<1x256xf32>
    %168 = vector.broadcast %166 : vector<4x1xf32> to vector<4x256xf32>
    %169 = vector.broadcast %167 : vector<1x256xf32> to vector<4x256xf32>
    %170 = arith.mulf %168, %169 : vector<4x256xf32>
    %171 = arith.addf %165, %170 : vector<4x256xf32>
    %c255_i32 = arith.constant 255 : i32
    %172 = tpu.dynamic_rotate %36 by %c255_i32 dim 1 : vector<4x256xf32>, i32 -> vector<4x256xf32>
    %173 = vector.extract_strided_slice %1 {offsets = [5, 0], sizes = [1, 256], strides = [1, 1]} : vector<9x256xf32> to vector<1x256xf32>
    %174 = vector.broadcast %173 : vector<1x256xf32> to vector<4x256xf32>
    %175 = arith.mulf %172, %174 : vector<4x256xf32>
    %176 = vector.extract_strided_slice %4 {offsets = [0, 20], sizes = [4, 1], strides = [1, 1]} : vector<4x36xf32> to vector<4x1xf32>
    %177 = vector.extract_strided_slice %175 {offsets = [0, 0], sizes = [1, 256], strides = [1, 1]} : vector<4x256xf32> to vector<1x256xf32>
    %178 = vector.broadcast %176 : vector<4x1xf32> to vector<4x256xf32>
    %179 = vector.broadcast %177 : vector<1x256xf32> to vector<4x256xf32>
    %180 = arith.mulf %178, %179 : vector<4x256xf32>
    %181 = arith.addf %171, %180 : vector<4x256xf32>
    %182 = vector.extract_strided_slice %4 {offsets = [0, 21], sizes = [4, 1], strides = [1, 1]} : vector<4x36xf32> to vector<4x1xf32>
    %183 = vector.extract_strided_slice %175 {offsets = [1, 0], sizes = [1, 256], strides = [1, 1]} : vector<4x256xf32> to vector<1x256xf32>
    %184 = vector.broadcast %182 : vector<4x1xf32> to vector<4x256xf32>
    %185 = vector.broadcast %183 : vector<1x256xf32> to vector<4x256xf32>
    %186 = arith.mulf %184, %185 : vector<4x256xf32>
    %187 = arith.addf %181, %186 : vector<4x256xf32>
    %188 = vector.extract_strided_slice %4 {offsets = [0, 22], sizes = [4, 1], strides = [1, 1]} : vector<4x36xf32> to vector<4x1xf32>
    %189 = vector.extract_strided_slice %175 {offsets = [2, 0], sizes = [1, 256], strides = [1, 1]} : vector<4x256xf32> to vector<1x256xf32>
    %190 = vector.broadcast %188 : vector<4x1xf32> to vector<4x256xf32>
    %191 = vector.broadcast %189 : vector<1x256xf32> to vector<4x256xf32>
    %192 = arith.mulf %190, %191 : vector<4x256xf32>
    %193 = arith.addf %187, %192 : vector<4x256xf32>
    %194 = vector.extract_strided_slice %4 {offsets = [0, 23], sizes = [4, 1], strides = [1, 1]} : vector<4x36xf32> to vector<4x1xf32>
    %195 = vector.extract_strided_slice %175 {offsets = [3, 0], sizes = [1, 256], strides = [1, 1]} : vector<4x256xf32> to vector<1x256xf32>
    %196 = vector.broadcast %194 : vector<4x1xf32> to vector<4x256xf32>
    %197 = vector.broadcast %195 : vector<1x256xf32> to vector<4x256xf32>
    %198 = arith.mulf %196, %197 : vector<4x256xf32>
    %199 = arith.addf %193, %198 : vector<4x256xf32>
    %c241_i32 = arith.constant 241 : i32
    %200 = tpu.dynamic_rotate %36 by %c241_i32 dim 1 : vector<4x256xf32>, i32 -> vector<4x256xf32>
    %201 = vector.extract_strided_slice %1 {offsets = [6, 0], sizes = [1, 256], strides = [1, 1]} : vector<9x256xf32> to vector<1x256xf32>
    %202 = vector.broadcast %201 : vector<1x256xf32> to vector<4x256xf32>
    %203 = arith.mulf %200, %202 : vector<4x256xf32>
    %204 = vector.extract_strided_slice %4 {offsets = [0, 24], sizes = [4, 1], strides = [1, 1]} : vector<4x36xf32> to vector<4x1xf32>
    %205 = vector.extract_strided_slice %203 {offsets = [0, 0], sizes = [1, 256], strides = [1, 1]} : vector<4x256xf32> to vector<1x256xf32>
    %206 = vector.broadcast %204 : vector<4x1xf32> to vector<4x256xf32>
    %207 = vector.broadcast %205 : vector<1x256xf32> to vector<4x256xf32>
    %208 = arith.mulf %206, %207 : vector<4x256xf32>
    %209 = arith.addf %199, %208 : vector<4x256xf32>
    %210 = vector.extract_strided_slice %4 {offsets = [0, 25], sizes = [4, 1], strides = [1, 1]} : vector<4x36xf32> to vector<4x1xf32>
    %211 = vector.extract_strided_slice %203 {offsets = [1, 0], sizes = [1, 256], strides = [1, 1]} : vector<4x256xf32> to vector<1x256xf32>
    %212 = vector.broadcast %210 : vector<4x1xf32> to vector<4x256xf32>
    %213 = vector.broadcast %211 : vector<1x256xf32> to vector<4x256xf32>
    %214 = arith.mulf %212, %213 : vector<4x256xf32>
    %215 = arith.addf %209, %214 : vector<4x256xf32>
    %216 = vector.extract_strided_slice %4 {offsets = [0, 26], sizes = [4, 1], strides = [1, 1]} : vector<4x36xf32> to vector<4x1xf32>
    %217 = vector.extract_strided_slice %203 {offsets = [2, 0], sizes = [1, 256], strides = [1, 1]} : vector<4x256xf32> to vector<1x256xf32>
    %218 = vector.broadcast %216 : vector<4x1xf32> to vector<4x256xf32>
    %219 = vector.broadcast %217 : vector<1x256xf32> to vector<4x256xf32>
    %220 = arith.mulf %218, %219 : vector<4x256xf32>
    %221 = arith.addf %215, %220 : vector<4x256xf32>
    %222 = vector.extract_strided_slice %4 {offsets = [0, 27], sizes = [4, 1], strides = [1, 1]} : vector<4x36xf32> to vector<4x1xf32>
    %223 = vector.extract_strided_slice %203 {offsets = [3, 0], sizes = [1, 256], strides = [1, 1]} : vector<4x256xf32> to vector<1x256xf32>
    %224 = vector.broadcast %222 : vector<4x1xf32> to vector<4x256xf32>
    %225 = vector.broadcast %223 : vector<1x256xf32> to vector<4x256xf32>
    %226 = arith.mulf %224, %225 : vector<4x256xf32>
    %227 = arith.addf %221, %226 : vector<4x256xf32>
    %c240_i32 = arith.constant 240 : i32
    %228 = tpu.dynamic_rotate %36 by %c240_i32 dim 1 : vector<4x256xf32>, i32 -> vector<4x256xf32>
    %229 = vector.extract_strided_slice %1 {offsets = [7, 0], sizes = [1, 256], strides = [1, 1]} : vector<9x256xf32> to vector<1x256xf32>
    %230 = vector.broadcast %229 : vector<1x256xf32> to vector<4x256xf32>
    %231 = arith.mulf %228, %230 : vector<4x256xf32>
    %232 = vector.extract_strided_slice %4 {offsets = [0, 28], sizes = [4, 1], strides = [1, 1]} : vector<4x36xf32> to vector<4x1xf32>
    %233 = vector.extract_strided_slice %231 {offsets = [0, 0], sizes = [1, 256], strides = [1, 1]} : vector<4x256xf32> to vector<1x256xf32>
    %234 = vector.broadcast %232 : vector<4x1xf32> to vector<4x256xf32>
    %235 = vector.broadcast %233 : vector<1x256xf32> to vector<4x256xf32>
    %236 = arith.mulf %234, %235 : vector<4x256xf32>
    %237 = arith.addf %227, %236 : vector<4x256xf32>
    %238 = vector.extract_strided_slice %4 {offsets = [0, 29], sizes = [4, 1], strides = [1, 1]} : vector<4x36xf32> to vector<4x1xf32>
    %239 = vector.extract_strided_slice %231 {offsets = [1, 0], sizes = [1, 256], strides = [1, 1]} : vector<4x256xf32> to vector<1x256xf32>
    %240 = vector.broadcast %238 : vector<4x1xf32> to vector<4x256xf32>
    %241 = vector.broadcast %239 : vector<1x256xf32> to vector<4x256xf32>
    %242 = arith.mulf %240, %241 : vector<4x256xf32>
    %243 = arith.addf %237, %242 : vector<4x256xf32>
    %244 = vector.extract_strided_slice %4 {offsets = [0, 30], sizes = [4, 1], strides = [1, 1]} : vector<4x36xf32> to vector<4x1xf32>
    %245 = vector.extract_strided_slice %231 {offsets = [2, 0], sizes = [1, 256], strides = [1, 1]} : vector<4x256xf32> to vector<1x256xf32>
    %246 = vector.broadcast %244 : vector<4x1xf32> to vector<4x256xf32>
    %247 = vector.broadcast %245 : vector<1x256xf32> to vector<4x256xf32>
    %248 = arith.mulf %246, %247 : vector<4x256xf32>
    %249 = arith.addf %243, %248 : vector<4x256xf32>
    %250 = vector.extract_strided_slice %4 {offsets = [0, 31], sizes = [4, 1], strides = [1, 1]} : vector<4x36xf32> to vector<4x1xf32>
    %251 = vector.extract_strided_slice %231 {offsets = [3, 0], sizes = [1, 256], strides = [1, 1]} : vector<4x256xf32> to vector<1x256xf32>
    %252 = vector.broadcast %250 : vector<4x1xf32> to vector<4x256xf32>
    %253 = vector.broadcast %251 : vector<1x256xf32> to vector<4x256xf32>
    %254 = arith.mulf %252, %253 : vector<4x256xf32>
    %255 = arith.addf %249, %254 : vector<4x256xf32>
    %c239_i32 = arith.constant 239 : i32
    %256 = tpu.dynamic_rotate %36 by %c239_i32 dim 1 : vector<4x256xf32>, i32 -> vector<4x256xf32>
    %257 = vector.extract_strided_slice %1 {offsets = [8, 0], sizes = [1, 256], strides = [1, 1]} : vector<9x256xf32> to vector<1x256xf32>
    %258 = vector.broadcast %257 : vector<1x256xf32> to vector<4x256xf32>
    %259 = arith.mulf %256, %258 : vector<4x256xf32>
    %260 = vector.extract_strided_slice %4 {offsets = [0, 32], sizes = [4, 1], strides = [1, 1]} : vector<4x36xf32> to vector<4x1xf32>
    %261 = vector.extract_strided_slice %259 {offsets = [0, 0], sizes = [1, 256], strides = [1, 1]} : vector<4x256xf32> to vector<1x256xf32>
    %262 = vector.broadcast %260 : vector<4x1xf32> to vector<4x256xf32>
    %263 = vector.broadcast %261 : vector<1x256xf32> to vector<4x256xf32>
    %264 = arith.mulf %262, %263 : vector<4x256xf32>
    %265 = arith.addf %255, %264 : vector<4x256xf32>
    %266 = vector.extract_strided_slice %4 {offsets = [0, 33], sizes = [4, 1], strides = [1, 1]} : vector<4x36xf32> to vector<4x1xf32>
    %267 = vector.extract_strided_slice %259 {offsets = [1, 0], sizes = [1, 256], strides = [1, 1]} : vector<4x256xf32> to vector<1x256xf32>
    %268 = vector.broadcast %266 : vector<4x1xf32> to vector<4x256xf32>
    %269 = vector.broadcast %267 : vector<1x256xf32> to vector<4x256xf32>
    %270 = arith.mulf %268, %269 : vector<4x256xf32>
    %271 = arith.addf %265, %270 : vector<4x256xf32>
    %272 = vector.extract_strided_slice %4 {offsets = [0, 34], sizes = [4, 1], strides = [1, 1]} : vector<4x36xf32> to vector<4x1xf32>
    %273 = vector.extract_strided_slice %259 {offsets = [2, 0], sizes = [1, 256], strides = [1, 1]} : vector<4x256xf32> to vector<1x256xf32>
    %274 = vector.broadcast %272 : vector<4x1xf32> to vector<4x256xf32>
    %275 = vector.broadcast %273 : vector<1x256xf32> to vector<4x256xf32>
    %276 = arith.mulf %274, %275 : vector<4x256xf32>
    %277 = arith.addf %271, %276 : vector<4x256xf32>
    %278 = vector.extract_strided_slice %4 {offsets = [0, 35], sizes = [4, 1], strides = [1, 1]} : vector<4x36xf32> to vector<4x1xf32>
    %279 = vector.extract_strided_slice %259 {offsets = [3, 0], sizes = [1, 256], strides = [1, 1]} : vector<4x256xf32> to vector<1x256xf32>
    %280 = vector.broadcast %278 : vector<4x1xf32> to vector<4x256xf32>
    %281 = vector.broadcast %279 : vector<1x256xf32> to vector<4x256xf32>
    %282 = arith.mulf %280, %281 : vector<4x256xf32>
    %283 = arith.addf %277, %282 : vector<4x256xf32>
    %284 = vector.broadcast %5 : vector<4x1xf32> to vector<4x256xf32>
    %285 = arith.addf %283, %284 : vector<4x256xf32>
    %cst_17 = arith.constant 0.000000e+00 : f32
    %286 = vector.broadcast %cst_17 : f32 to vector<4x256xf32>
    %287 = arith.maximumf %285, %286 : vector<4x256xf32>
    %288 = vector.extract_strided_slice %6 {offsets = [0, 0], sizes = [16, 1], strides = [1, 1]} : vector<16x4xf32> to vector<16x1xf32>
    %289 = vector.extract_strided_slice %287 {offsets = [0, 0], sizes = [1, 256], strides = [1, 1]} : vector<4x256xf32> to vector<1x256xf32>
    %290 = vector.broadcast %288 : vector<16x1xf32> to vector<16x256xf32>
    %291 = vector.broadcast %289 : vector<1x256xf32> to vector<16x256xf32>
    %292 = arith.mulf %290, %291 : vector<16x256xf32>
    %293 = vector.extract_strided_slice %6 {offsets = [0, 1], sizes = [16, 1], strides = [1, 1]} : vector<16x4xf32> to vector<16x1xf32>
    %294 = vector.extract_strided_slice %287 {offsets = [1, 0], sizes = [1, 256], strides = [1, 1]} : vector<4x256xf32> to vector<1x256xf32>
    %295 = vector.broadcast %293 : vector<16x1xf32> to vector<16x256xf32>
    %296 = vector.broadcast %294 : vector<1x256xf32> to vector<16x256xf32>
    %297 = arith.mulf %295, %296 : vector<16x256xf32>
    %298 = arith.addf %292, %297 : vector<16x256xf32>
    %299 = vector.extract_strided_slice %6 {offsets = [0, 2], sizes = [16, 1], strides = [1, 1]} : vector<16x4xf32> to vector<16x1xf32>
    %300 = vector.extract_strided_slice %287 {offsets = [2, 0], sizes = [1, 256], strides = [1, 1]} : vector<4x256xf32> to vector<1x256xf32>
    %301 = vector.broadcast %299 : vector<16x1xf32> to vector<16x256xf32>
    %302 = vector.broadcast %300 : vector<1x256xf32> to vector<16x256xf32>
    %303 = arith.mulf %301, %302 : vector<16x256xf32>
    %304 = arith.addf %298, %303 : vector<16x256xf32>
    %305 = vector.extract_strided_slice %6 {offsets = [0, 3], sizes = [16, 1], strides = [1, 1]} : vector<16x4xf32> to vector<16x1xf32>
    %306 = vector.extract_strided_slice %287 {offsets = [3, 0], sizes = [1, 256], strides = [1, 1]} : vector<4x256xf32> to vector<1x256xf32>
    %307 = vector.broadcast %305 : vector<16x1xf32> to vector<16x256xf32>
    %308 = vector.broadcast %306 : vector<1x256xf32> to vector<16x256xf32>
    %309 = arith.mulf %307, %308 : vector<16x256xf32>
    %310 = arith.addf %304, %309 : vector<16x256xf32>
    %311 = vector.extract_strided_slice %7 {offsets = [0, 0], sizes = [16, 1], strides = [1, 1]} : vector<16x4xf32> to vector<16x1xf32>
    %312 = vector.extract_strided_slice %9 {offsets = [0, 0], sizes = [1, 256], strides = [1, 1]} : vector<4x256xf32> to vector<1x256xf32>
    %313 = vector.broadcast %311 : vector<16x1xf32> to vector<16x256xf32>
    %314 = vector.broadcast %312 : vector<1x256xf32> to vector<16x256xf32>
    %315 = arith.mulf %313, %314 : vector<16x256xf32>
    %316 = arith.addf %310, %315 : vector<16x256xf32>
    %317 = vector.extract_strided_slice %7 {offsets = [0, 1], sizes = [16, 1], strides = [1, 1]} : vector<16x4xf32> to vector<16x1xf32>
    %318 = vector.extract_strided_slice %9 {offsets = [1, 0], sizes = [1, 256], strides = [1, 1]} : vector<4x256xf32> to vector<1x256xf32>
    %319 = vector.broadcast %317 : vector<16x1xf32> to vector<16x256xf32>
    %320 = vector.broadcast %318 : vector<1x256xf32> to vector<16x256xf32>
    %321 = arith.mulf %319, %320 : vector<16x256xf32>
    %322 = arith.addf %316, %321 : vector<16x256xf32>
    %323 = vector.extract_strided_slice %7 {offsets = [0, 2], sizes = [16, 1], strides = [1, 1]} : vector<16x4xf32> to vector<16x1xf32>
    %324 = vector.extract_strided_slice %9 {offsets = [2, 0], sizes = [1, 256], strides = [1, 1]} : vector<4x256xf32> to vector<1x256xf32>
    %325 = vector.broadcast %323 : vector<16x1xf32> to vector<16x256xf32>
    %326 = vector.broadcast %324 : vector<1x256xf32> to vector<16x256xf32>
    %327 = arith.mulf %325, %326 : vector<16x256xf32>
    %328 = arith.addf %322, %327 : vector<16x256xf32>
    %329 = vector.extract_strided_slice %7 {offsets = [0, 3], sizes = [16, 1], strides = [1, 1]} : vector<16x4xf32> to vector<16x1xf32>
    %330 = vector.extract_strided_slice %9 {offsets = [3, 0], sizes = [1, 256], strides = [1, 1]} : vector<4x256xf32> to vector<1x256xf32>
    %331 = vector.broadcast %329 : vector<16x1xf32> to vector<16x256xf32>
    %332 = vector.broadcast %330 : vector<1x256xf32> to vector<16x256xf32>
    %333 = arith.mulf %331, %332 : vector<16x256xf32>
    %334 = arith.addf %328, %333 : vector<16x256xf32>
    %335 = vector.broadcast %8 : vector<16x1xf32> to vector<16x256xf32>
    %336 = arith.addf %334, %335 : vector<16x256xf32>
    %cst_18 = arith.constant 0.000000e+00 : f32
    %337 = vector.broadcast %cst_18 : f32 to vector<16x256xf32>
    %338 = arith.maximumf %336, %337 : vector<16x256xf32>
    %c0_19 = arith.constant 0 : index
    %c0_20 = arith.constant 0 : index
    %339 = vector.load %arg10[%c0_19, %c0_20] : memref<32x256xf32, #tpu.memory_space<vmem>>, vector<16x256xf32>
    tpu.vector_store %arg10[%c0_19, %c0_20], %338 {strides = array<i32>} : memref<32x256xf32, #tpu.memory_space<vmem>>, vector<16x256xf32>,
    %340 = vector.extract_strided_slice %0 {offsets = [4, 0], sizes = [4, 256], strides = [1, 1]} : vector<8x256xf32> to vector<4x256xf32>
    %341 = vector.extract_strided_slice %2 {offsets = [0, 0], sizes = [4, 1], strides = [1, 1]} : vector<4x4xf32> to vector<4x1xf32>
    %342 = vector.extract_strided_slice %340 {offsets = [0, 0], sizes = [1, 256], strides = [1, 1]} : vector<4x256xf32> to vector<1x256xf32>
    %343 = vector.broadcast %341 : vector<4x1xf32> to vector<4x256xf32>
    %344 = vector.broadcast %342 : vector<1x256xf32> to vector<4x256xf32>
    %345 = arith.mulf %343, %344 : vector<4x256xf32>
    %346 = vector.extract_strided_slice %2 {offsets = [0, 1], sizes = [4, 1], strides = [1, 1]} : vector<4x4xf32> to vector<4x1xf32>
    %347 = vector.extract_strided_slice %340 {offsets = [1, 0], sizes = [1, 256], strides = [1, 1]} : vector<4x256xf32> to vector<1x256xf32>
    %348 = vector.broadcast %346 : vector<4x1xf32> to vector<4x256xf32>
    %349 = vector.broadcast %347 : vector<1x256xf32> to vector<4x256xf32>
    %350 = arith.mulf %348, %349 : vector<4x256xf32>
    %351 = arith.addf %345, %350 : vector<4x256xf32>
    %352 = vector.extract_strided_slice %2 {offsets = [0, 2], sizes = [4, 1], strides = [1, 1]} : vector<4x4xf32> to vector<4x1xf32>
    %353 = vector.extract_strided_slice %340 {offsets = [2, 0], sizes = [1, 256], strides = [1, 1]} : vector<4x256xf32> to vector<1x256xf32>
    %354 = vector.broadcast %352 : vector<4x1xf32> to vector<4x256xf32>
    %355 = vector.broadcast %353 : vector<1x256xf32> to vector<4x256xf32>
    %356 = arith.mulf %354, %355 : vector<4x256xf32>
    %357 = arith.addf %351, %356 : vector<4x256xf32>
    %358 = vector.extract_strided_slice %2 {offsets = [0, 3], sizes = [4, 1], strides = [1, 1]} : vector<4x4xf32> to vector<4x1xf32>
    %359 = vector.extract_strided_slice %340 {offsets = [3, 0], sizes = [1, 256], strides = [1, 1]} : vector<4x256xf32> to vector<1x256xf32>
    %360 = vector.broadcast %358 : vector<4x1xf32> to vector<4x256xf32>
    %361 = vector.broadcast %359 : vector<1x256xf32> to vector<4x256xf32>
    %362 = arith.mulf %360, %361 : vector<4x256xf32>
    %363 = arith.addf %357, %362 : vector<4x256xf32>
    %364 = vector.broadcast %3 : vector<4x1xf32> to vector<4x256xf32>
    %365 = arith.addf %363, %364 : vector<4x256xf32>
    %cst_21 = arith.constant 0.000000e+00 : f32
    %366 = vector.broadcast %cst_21 : f32 to vector<4x256xf32>
    %367 = arith.maximumf %365, %366 : vector<4x256xf32>
    %c17_i32_22 = arith.constant 17 : i32
    %368 = tpu.dynamic_rotate %367 by %c17_i32_22 dim 1 : vector<4x256xf32>, i32 -> vector<4x256xf32>
    %369 = vector.extract_strided_slice %1 {offsets = [0, 0], sizes = [1, 256], strides = [1, 1]} : vector<9x256xf32> to vector<1x256xf32>
    %370 = vector.broadcast %369 : vector<1x256xf32> to vector<4x256xf32>
    %371 = arith.mulf %368, %370 : vector<4x256xf32>
    %372 = vector.extract_strided_slice %4 {offsets = [0, 0], sizes = [4, 1], strides = [1, 1]} : vector<4x36xf32> to vector<4x1xf32>
    %373 = vector.extract_strided_slice %371 {offsets = [0, 0], sizes = [1, 256], strides = [1, 1]} : vector<4x256xf32> to vector<1x256xf32>
    %374 = vector.broadcast %372 : vector<4x1xf32> to vector<4x256xf32>
    %375 = vector.broadcast %373 : vector<1x256xf32> to vector<4x256xf32>
    %376 = arith.mulf %374, %375 : vector<4x256xf32>
    %377 = vector.extract_strided_slice %4 {offsets = [0, 1], sizes = [4, 1], strides = [1, 1]} : vector<4x36xf32> to vector<4x1xf32>
    %378 = vector.extract_strided_slice %371 {offsets = [1, 0], sizes = [1, 256], strides = [1, 1]} : vector<4x256xf32> to vector<1x256xf32>
    %379 = vector.broadcast %377 : vector<4x1xf32> to vector<4x256xf32>
    %380 = vector.broadcast %378 : vector<1x256xf32> to vector<4x256xf32>
    %381 = arith.mulf %379, %380 : vector<4x256xf32>
    %382 = arith.addf %376, %381 : vector<4x256xf32>
    %383 = vector.extract_strided_slice %4 {offsets = [0, 2], sizes = [4, 1], strides = [1, 1]} : vector<4x36xf32> to vector<4x1xf32>
    %384 = vector.extract_strided_slice %371 {offsets = [2, 0], sizes = [1, 256], strides = [1, 1]} : vector<4x256xf32> to vector<1x256xf32>
    %385 = vector.broadcast %383 : vector<4x1xf32> to vector<4x256xf32>
    %386 = vector.broadcast %384 : vector<1x256xf32> to vector<4x256xf32>
    %387 = arith.mulf %385, %386 : vector<4x256xf32>
    %388 = arith.addf %382, %387 : vector<4x256xf32>
    %389 = vector.extract_strided_slice %4 {offsets = [0, 3], sizes = [4, 1], strides = [1, 1]} : vector<4x36xf32> to vector<4x1xf32>
    %390 = vector.extract_strided_slice %371 {offsets = [3, 0], sizes = [1, 256], strides = [1, 1]} : vector<4x256xf32> to vector<1x256xf32>
    %391 = vector.broadcast %389 : vector<4x1xf32> to vector<4x256xf32>
    %392 = vector.broadcast %390 : vector<1x256xf32> to vector<4x256xf32>
    %393 = arith.mulf %391, %392 : vector<4x256xf32>
    %394 = arith.addf %388, %393 : vector<4x256xf32>
    %c16_i32_23 = arith.constant 16 : i32
    %395 = tpu.dynamic_rotate %367 by %c16_i32_23 dim 1 : vector<4x256xf32>, i32 -> vector<4x256xf32>
    %396 = vector.extract_strided_slice %1 {offsets = [1, 0], sizes = [1, 256], strides = [1, 1]} : vector<9x256xf32> to vector<1x256xf32>
    %397 = vector.broadcast %396 : vector<1x256xf32> to vector<4x256xf32>
    %398 = arith.mulf %395, %397 : vector<4x256xf32>
    %399 = vector.extract_strided_slice %4 {offsets = [0, 4], sizes = [4, 1], strides = [1, 1]} : vector<4x36xf32> to vector<4x1xf32>
    %400 = vector.extract_strided_slice %398 {offsets = [0, 0], sizes = [1, 256], strides = [1, 1]} : vector<4x256xf32> to vector<1x256xf32>
    %401 = vector.broadcast %399 : vector<4x1xf32> to vector<4x256xf32>
    %402 = vector.broadcast %400 : vector<1x256xf32> to vector<4x256xf32>
    %403 = arith.mulf %401, %402 : vector<4x256xf32>
    %404 = arith.addf %394, %403 : vector<4x256xf32>
    %405 = vector.extract_strided_slice %4 {offsets = [0, 5], sizes = [4, 1], strides = [1, 1]} : vector<4x36xf32> to vector<4x1xf32>
    %406 = vector.extract_strided_slice %398 {offsets = [1, 0], sizes = [1, 256], strides = [1, 1]} : vector<4x256xf32> to vector<1x256xf32>
    %407 = vector.broadcast %405 : vector<4x1xf32> to vector<4x256xf32>
    %408 = vector.broadcast %406 : vector<1x256xf32> to vector<4x256xf32>
    %409 = arith.mulf %407, %408 : vector<4x256xf32>
    %410 = arith.addf %404, %409 : vector<4x256xf32>
    %411 = vector.extract_strided_slice %4 {offsets = [0, 6], sizes = [4, 1], strides = [1, 1]} : vector<4x36xf32> to vector<4x1xf32>
    %412 = vector.extract_strided_slice %398 {offsets = [2, 0], sizes = [1, 256], strides = [1, 1]} : vector<4x256xf32> to vector<1x256xf32>
    %413 = vector.broadcast %411 : vector<4x1xf32> to vector<4x256xf32>
    %414 = vector.broadcast %412 : vector<1x256xf32> to vector<4x256xf32>
    %415 = arith.mulf %413, %414 : vector<4x256xf32>
    %416 = arith.addf %410, %415 : vector<4x256xf32>
    %417 = vector.extract_strided_slice %4 {offsets = [0, 7], sizes = [4, 1], strides = [1, 1]} : vector<4x36xf32> to vector<4x1xf32>
    %418 = vector.extract_strided_slice %398 {offsets = [3, 0], sizes = [1, 256], strides = [1, 1]} : vector<4x256xf32> to vector<1x256xf32>
    %419 = vector.broadcast %417 : vector<4x1xf32> to vector<4x256xf32>
    %420 = vector.broadcast %418 : vector<1x256xf32> to vector<4x256xf32>
    %421 = arith.mulf %419, %420 : vector<4x256xf32>
    %422 = arith.addf %416, %421 : vector<4x256xf32>
    %c15_i32_24 = arith.constant 15 : i32
    %423 = tpu.dynamic_rotate %367 by %c15_i32_24 dim 1 : vector<4x256xf32>, i32 -> vector<4x256xf32>
    %424 = vector.extract_strided_slice %1 {offsets = [2, 0], sizes = [1, 256], strides = [1, 1]} : vector<9x256xf32> to vector<1x256xf32>
    %425 = vector.broadcast %424 : vector<1x256xf32> to vector<4x256xf32>
    %426 = arith.mulf %423, %425 : vector<4x256xf32>
    %427 = vector.extract_strided_slice %4 {offsets = [0, 8], sizes = [4, 1], strides = [1, 1]} : vector<4x36xf32> to vector<4x1xf32>
    %428 = vector.extract_strided_slice %426 {offsets = [0, 0], sizes = [1, 256], strides = [1, 1]} : vector<4x256xf32> to vector<1x256xf32>
    %429 = vector.broadcast %427 : vector<4x1xf32> to vector<4x256xf32>
    %430 = vector.broadcast %428 : vector<1x256xf32> to vector<4x256xf32>
    %431 = arith.mulf %429, %430 : vector<4x256xf32>
    %432 = arith.addf %422, %431 : vector<4x256xf32>
    %433 = vector.extract_strided_slice %4 {offsets = [0, 9], sizes = [4, 1], strides = [1, 1]} : vector<4x36xf32> to vector<4x1xf32>
    %434 = vector.extract_strided_slice %426 {offsets = [1, 0], sizes = [1, 256], strides = [1, 1]} : vector<4x256xf32> to vector<1x256xf32>
    %435 = vector.broadcast %433 : vector<4x1xf32> to vector<4x256xf32>
    %436 = vector.broadcast %434 : vector<1x256xf32> to vector<4x256xf32>
    %437 = arith.mulf %435, %436 : vector<4x256xf32>
    %438 = arith.addf %432, %437 : vector<4x256xf32>
    %439 = vector.extract_strided_slice %4 {offsets = [0, 10], sizes = [4, 1], strides = [1, 1]} : vector<4x36xf32> to vector<4x1xf32>
    %440 = vector.extract_strided_slice %426 {offsets = [2, 0], sizes = [1, 256], strides = [1, 1]} : vector<4x256xf32> to vector<1x256xf32>
    %441 = vector.broadcast %439 : vector<4x1xf32> to vector<4x256xf32>
    %442 = vector.broadcast %440 : vector<1x256xf32> to vector<4x256xf32>
    %443 = arith.mulf %441, %442 : vector<4x256xf32>
    %444 = arith.addf %438, %443 : vector<4x256xf32>
    %445 = vector.extract_strided_slice %4 {offsets = [0, 11], sizes = [4, 1], strides = [1, 1]} : vector<4x36xf32> to vector<4x1xf32>
    %446 = vector.extract_strided_slice %426 {offsets = [3, 0], sizes = [1, 256], strides = [1, 1]} : vector<4x256xf32> to vector<1x256xf32>
    %447 = vector.broadcast %445 : vector<4x1xf32> to vector<4x256xf32>
    %448 = vector.broadcast %446 : vector<1x256xf32> to vector<4x256xf32>
    %449 = arith.mulf %447, %448 : vector<4x256xf32>
    %450 = arith.addf %444, %449 : vector<4x256xf32>
    %c1_i32_25 = arith.constant 1 : i32
    %451 = tpu.dynamic_rotate %367 by %c1_i32_25 dim 1 : vector<4x256xf32>, i32 -> vector<4x256xf32>
    %452 = vector.extract_strided_slice %1 {offsets = [3, 0], sizes = [1, 256], strides = [1, 1]} : vector<9x256xf32> to vector<1x256xf32>
    %453 = vector.broadcast %452 : vector<1x256xf32> to vector<4x256xf32>
    %454 = arith.mulf %451, %453 : vector<4x256xf32>
    %455 = vector.extract_strided_slice %4 {offsets = [0, 12], sizes = [4, 1], strides = [1, 1]} : vector<4x36xf32> to vector<4x1xf32>
    %456 = vector.extract_strided_slice %454 {offsets = [0, 0], sizes = [1, 256], strides = [1, 1]} : vector<4x256xf32> to vector<1x256xf32>
    %457 = vector.broadcast %455 : vector<4x1xf32> to vector<4x256xf32>
    %458 = vector.broadcast %456 : vector<1x256xf32> to vector<4x256xf32>
    %459 = arith.mulf %457, %458 : vector<4x256xf32>
    %460 = arith.addf %450, %459 : vector<4x256xf32>
    %461 = vector.extract_strided_slice %4 {offsets = [0, 13], sizes = [4, 1], strides = [1, 1]} : vector<4x36xf32> to vector<4x1xf32>
    %462 = vector.extract_strided_slice %454 {offsets = [1, 0], sizes = [1, 256], strides = [1, 1]} : vector<4x256xf32> to vector<1x256xf32>
    %463 = vector.broadcast %461 : vector<4x1xf32> to vector<4x256xf32>
    %464 = vector.broadcast %462 : vector<1x256xf32> to vector<4x256xf32>
    %465 = arith.mulf %463, %464 : vector<4x256xf32>
    %466 = arith.addf %460, %465 : vector<4x256xf32>
    %467 = vector.extract_strided_slice %4 {offsets = [0, 14], sizes = [4, 1], strides = [1, 1]} : vector<4x36xf32> to vector<4x1xf32>
    %468 = vector.extract_strided_slice %454 {offsets = [2, 0], sizes = [1, 256], strides = [1, 1]} : vector<4x256xf32> to vector<1x256xf32>
    %469 = vector.broadcast %467 : vector<4x1xf32> to vector<4x256xf32>
    %470 = vector.broadcast %468 : vector<1x256xf32> to vector<4x256xf32>
    %471 = arith.mulf %469, %470 : vector<4x256xf32>
    %472 = arith.addf %466, %471 : vector<4x256xf32>
    %473 = vector.extract_strided_slice %4 {offsets = [0, 15], sizes = [4, 1], strides = [1, 1]} : vector<4x36xf32> to vector<4x1xf32>
    %474 = vector.extract_strided_slice %454 {offsets = [3, 0], sizes = [1, 256], strides = [1, 1]} : vector<4x256xf32> to vector<1x256xf32>
    %475 = vector.broadcast %473 : vector<4x1xf32> to vector<4x256xf32>
    %476 = vector.broadcast %474 : vector<1x256xf32> to vector<4x256xf32>
    %477 = arith.mulf %475, %476 : vector<4x256xf32>
    %478 = arith.addf %472, %477 : vector<4x256xf32>
    %479 = vector.extract_strided_slice %4 {offsets = [0, 16], sizes = [4, 1], strides = [1, 1]} : vector<4x36xf32> to vector<4x1xf32>
    %480 = vector.extract_strided_slice %367 {offsets = [0, 0], sizes = [1, 256], strides = [1, 1]} : vector<4x256xf32> to vector<1x256xf32>
    %481 = vector.broadcast %479 : vector<4x1xf32> to vector<4x256xf32>
    %482 = vector.broadcast %480 : vector<1x256xf32> to vector<4x256xf32>
    %483 = arith.mulf %481, %482 : vector<4x256xf32>
    %484 = arith.addf %478, %483 : vector<4x256xf32>
    %485 = vector.extract_strided_slice %4 {offsets = [0, 17], sizes = [4, 1], strides = [1, 1]} : vector<4x36xf32> to vector<4x1xf32>
    %486 = vector.extract_strided_slice %367 {offsets = [1, 0], sizes = [1, 256], strides = [1, 1]} : vector<4x256xf32> to vector<1x256xf32>
    %487 = vector.broadcast %485 : vector<4x1xf32> to vector<4x256xf32>
    %488 = vector.broadcast %486 : vector<1x256xf32> to vector<4x256xf32>
    %489 = arith.mulf %487, %488 : vector<4x256xf32>
    %490 = arith.addf %484, %489 : vector<4x256xf32>
    %491 = vector.extract_strided_slice %4 {offsets = [0, 18], sizes = [4, 1], strides = [1, 1]} : vector<4x36xf32> to vector<4x1xf32>
    %492 = vector.extract_strided_slice %367 {offsets = [2, 0], sizes = [1, 256], strides = [1, 1]} : vector<4x256xf32> to vector<1x256xf32>
    %493 = vector.broadcast %491 : vector<4x1xf32> to vector<4x256xf32>
    %494 = vector.broadcast %492 : vector<1x256xf32> to vector<4x256xf32>
    %495 = arith.mulf %493, %494 : vector<4x256xf32>
    %496 = arith.addf %490, %495 : vector<4x256xf32>
    %497 = vector.extract_strided_slice %4 {offsets = [0, 19], sizes = [4, 1], strides = [1, 1]} : vector<4x36xf32> to vector<4x1xf32>
    %498 = vector.extract_strided_slice %367 {offsets = [3, 0], sizes = [1, 256], strides = [1, 1]} : vector<4x256xf32> to vector<1x256xf32>
    %499 = vector.broadcast %497 : vector<4x1xf32> to vector<4x256xf32>
    %500 = vector.broadcast %498 : vector<1x256xf32> to vector<4x256xf32>
    %501 = arith.mulf %499, %500 : vector<4x256xf32>
    %502 = arith.addf %496, %501 : vector<4x256xf32>
    %c255_i32_26 = arith.constant 255 : i32
    %503 = tpu.dynamic_rotate %367 by %c255_i32_26 dim 1 : vector<4x256xf32>, i32 -> vector<4x256xf32>
    %504 = vector.extract_strided_slice %1 {offsets = [5, 0], sizes = [1, 256], strides = [1, 1]} : vector<9x256xf32> to vector<1x256xf32>
    %505 = vector.broadcast %504 : vector<1x256xf32> to vector<4x256xf32>
    %506 = arith.mulf %503, %505 : vector<4x256xf32>
    %507 = vector.extract_strided_slice %4 {offsets = [0, 20], sizes = [4, 1], strides = [1, 1]} : vector<4x36xf32> to vector<4x1xf32>
    %508 = vector.extract_strided_slice %506 {offsets = [0, 0], sizes = [1, 256], strides = [1, 1]} : vector<4x256xf32> to vector<1x256xf32>
    %509 = vector.broadcast %507 : vector<4x1xf32> to vector<4x256xf32>
    %510 = vector.broadcast %508 : vector<1x256xf32> to vector<4x256xf32>
    %511 = arith.mulf %509, %510 : vector<4x256xf32>
    %512 = arith.addf %502, %511 : vector<4x256xf32>
    %513 = vector.extract_strided_slice %4 {offsets = [0, 21], sizes = [4, 1], strides = [1, 1]} : vector<4x36xf32> to vector<4x1xf32>
    %514 = vector.extract_strided_slice %506 {offsets = [1, 0], sizes = [1, 256], strides = [1, 1]} : vector<4x256xf32> to vector<1x256xf32>
    %515 = vector.broadcast %513 : vector<4x1xf32> to vector<4x256xf32>
    %516 = vector.broadcast %514 : vector<1x256xf32> to vector<4x256xf32>
    %517 = arith.mulf %515, %516 : vector<4x256xf32>
    %518 = arith.addf %512, %517 : vector<4x256xf32>
    %519 = vector.extract_strided_slice %4 {offsets = [0, 22], sizes = [4, 1], strides = [1, 1]} : vector<4x36xf32> to vector<4x1xf32>
    %520 = vector.extract_strided_slice %506 {offsets = [2, 0], sizes = [1, 256], strides = [1, 1]} : vector<4x256xf32> to vector<1x256xf32>
    %521 = vector.broadcast %519 : vector<4x1xf32> to vector<4x256xf32>
    %522 = vector.broadcast %520 : vector<1x256xf32> to vector<4x256xf32>
    %523 = arith.mulf %521, %522 : vector<4x256xf32>
    %524 = arith.addf %518, %523 : vector<4x256xf32>
    %525 = vector.extract_strided_slice %4 {offsets = [0, 23], sizes = [4, 1], strides = [1, 1]} : vector<4x36xf32> to vector<4x1xf32>
    %526 = vector.extract_strided_slice %506 {offsets = [3, 0], sizes = [1, 256], strides = [1, 1]} : vector<4x256xf32> to vector<1x256xf32>
    %527 = vector.broadcast %525 : vector<4x1xf32> to vector<4x256xf32>
    %528 = vector.broadcast %526 : vector<1x256xf32> to vector<4x256xf32>
    %529 = arith.mulf %527, %528 : vector<4x256xf32>
    %530 = arith.addf %524, %529 : vector<4x256xf32>
    %c241_i32_27 = arith.constant 241 : i32
    %531 = tpu.dynamic_rotate %367 by %c241_i32_27 dim 1 : vector<4x256xf32>, i32 -> vector<4x256xf32>
    %532 = vector.extract_strided_slice %1 {offsets = [6, 0], sizes = [1, 256], strides = [1, 1]} : vector<9x256xf32> to vector<1x256xf32>
    %533 = vector.broadcast %532 : vector<1x256xf32> to vector<4x256xf32>
    %534 = arith.mulf %531, %533 : vector<4x256xf32>
    %535 = vector.extract_strided_slice %4 {offsets = [0, 24], sizes = [4, 1], strides = [1, 1]} : vector<4x36xf32> to vector<4x1xf32>
    %536 = vector.extract_strided_slice %534 {offsets = [0, 0], sizes = [1, 256], strides = [1, 1]} : vector<4x256xf32> to vector<1x256xf32>
    %537 = vector.broadcast %535 : vector<4x1xf32> to vector<4x256xf32>
    %538 = vector.broadcast %536 : vector<1x256xf32> to vector<4x256xf32>
    %539 = arith.mulf %537, %538 : vector<4x256xf32>
    %540 = arith.addf %530, %539 : vector<4x256xf32>
    %541 = vector.extract_strided_slice %4 {offsets = [0, 25], sizes = [4, 1], strides = [1, 1]} : vector<4x36xf32> to vector<4x1xf32>
    %542 = vector.extract_strided_slice %534 {offsets = [1, 0], sizes = [1, 256], strides = [1, 1]} : vector<4x256xf32> to vector<1x256xf32>
    %543 = vector.broadcast %541 : vector<4x1xf32> to vector<4x256xf32>
    %544 = vector.broadcast %542 : vector<1x256xf32> to vector<4x256xf32>
    %545 = arith.mulf %543, %544 : vector<4x256xf32>
    %546 = arith.addf %540, %545 : vector<4x256xf32>
    %547 = vector.extract_strided_slice %4 {offsets = [0, 26], sizes = [4, 1], strides = [1, 1]} : vector<4x36xf32> to vector<4x1xf32>
    %548 = vector.extract_strided_slice %534 {offsets = [2, 0], sizes = [1, 256], strides = [1, 1]} : vector<4x256xf32> to vector<1x256xf32>
    %549 = vector.broadcast %547 : vector<4x1xf32> to vector<4x256xf32>
    %550 = vector.broadcast %548 : vector<1x256xf32> to vector<4x256xf32>
    %551 = arith.mulf %549, %550 : vector<4x256xf32>
    %552 = arith.addf %546, %551 : vector<4x256xf32>
    %553 = vector.extract_strided_slice %4 {offsets = [0, 27], sizes = [4, 1], strides = [1, 1]} : vector<4x36xf32> to vector<4x1xf32>
    %554 = vector.extract_strided_slice %534 {offsets = [3, 0], sizes = [1, 256], strides = [1, 1]} : vector<4x256xf32> to vector<1x256xf32>
    %555 = vector.broadcast %553 : vector<4x1xf32> to vector<4x256xf32>
    %556 = vector.broadcast %554 : vector<1x256xf32> to vector<4x256xf32>
    %557 = arith.mulf %555, %556 : vector<4x256xf32>
    %558 = arith.addf %552, %557 : vector<4x256xf32>
    %c240_i32_28 = arith.constant 240 : i32
    %559 = tpu.dynamic_rotate %367 by %c240_i32_28 dim 1 : vector<4x256xf32>, i32 -> vector<4x256xf32>
    %560 = vector.extract_strided_slice %1 {offsets = [7, 0], sizes = [1, 256], strides = [1, 1]} : vector<9x256xf32> to vector<1x256xf32>
    %561 = vector.broadcast %560 : vector<1x256xf32> to vector<4x256xf32>
    %562 = arith.mulf %559, %561 : vector<4x256xf32>
    %563 = vector.extract_strided_slice %4 {offsets = [0, 28], sizes = [4, 1], strides = [1, 1]} : vector<4x36xf32> to vector<4x1xf32>
    %564 = vector.extract_strided_slice %562 {offsets = [0, 0], sizes = [1, 256], strides = [1, 1]} : vector<4x256xf32> to vector<1x256xf32>
    %565 = vector.broadcast %563 : vector<4x1xf32> to vector<4x256xf32>
    %566 = vector.broadcast %564 : vector<1x256xf32> to vector<4x256xf32>
    %567 = arith.mulf %565, %566 : vector<4x256xf32>
    %568 = arith.addf %558, %567 : vector<4x256xf32>
    %569 = vector.extract_strided_slice %4 {offsets = [0, 29], sizes = [4, 1], strides = [1, 1]} : vector<4x36xf32> to vector<4x1xf32>
    %570 = vector.extract_strided_slice %562 {offsets = [1, 0], sizes = [1, 256], strides = [1, 1]} : vector<4x256xf32> to vector<1x256xf32>
    %571 = vector.broadcast %569 : vector<4x1xf32> to vector<4x256xf32>
    %572 = vector.broadcast %570 : vector<1x256xf32> to vector<4x256xf32>
    %573 = arith.mulf %571, %572 : vector<4x256xf32>
    %574 = arith.addf %568, %573 : vector<4x256xf32>
    %575 = vector.extract_strided_slice %4 {offsets = [0, 30], sizes = [4, 1], strides = [1, 1]} : vector<4x36xf32> to vector<4x1xf32>
    %576 = vector.extract_strided_slice %562 {offsets = [2, 0], sizes = [1, 256], strides = [1, 1]} : vector<4x256xf32> to vector<1x256xf32>
    %577 = vector.broadcast %575 : vector<4x1xf32> to vector<4x256xf32>
    %578 = vector.broadcast %576 : vector<1x256xf32> to vector<4x256xf32>
    %579 = arith.mulf %577, %578 : vector<4x256xf32>
    %580 = arith.addf %574, %579 : vector<4x256xf32>
    %581 = vector.extract_strided_slice %4 {offsets = [0, 31], sizes = [4, 1], strides = [1, 1]} : vector<4x36xf32> to vector<4x1xf32>
    %582 = vector.extract_strided_slice %562 {offsets = [3, 0], sizes = [1, 256], strides = [1, 1]} : vector<4x256xf32> to vector<1x256xf32>
    %583 = vector.broadcast %581 : vector<4x1xf32> to vector<4x256xf32>
    %584 = vector.broadcast %582 : vector<1x256xf32> to vector<4x256xf32>
    %585 = arith.mulf %583, %584 : vector<4x256xf32>
    %586 = arith.addf %580, %585 : vector<4x256xf32>
    %c239_i32_29 = arith.constant 239 : i32
    %587 = tpu.dynamic_rotate %367 by %c239_i32_29 dim 1 : vector<4x256xf32>, i32 -> vector<4x256xf32>
    %588 = vector.extract_strided_slice %1 {offsets = [8, 0], sizes = [1, 256], strides = [1, 1]} : vector<9x256xf32> to vector<1x256xf32>
    %589 = vector.broadcast %588 : vector<1x256xf32> to vector<4x256xf32>
    %590 = arith.mulf %587, %589 : vector<4x256xf32>
    %591 = vector.extract_strided_slice %4 {offsets = [0, 32], sizes = [4, 1], strides = [1, 1]} : vector<4x36xf32> to vector<4x1xf32>
    %592 = vector.extract_strided_slice %590 {offsets = [0, 0], sizes = [1, 256], strides = [1, 1]} : vector<4x256xf32> to vector<1x256xf32>
    %593 = vector.broadcast %591 : vector<4x1xf32> to vector<4x256xf32>
    %594 = vector.broadcast %592 : vector<1x256xf32> to vector<4x256xf32>
    %595 = arith.mulf %593, %594 : vector<4x256xf32>
    %596 = arith.addf %586, %595 : vector<4x256xf32>
    %597 = vector.extract_strided_slice %4 {offsets = [0, 33], sizes = [4, 1], strides = [1, 1]} : vector<4x36xf32> to vector<4x1xf32>
    %598 = vector.extract_strided_slice %590 {offsets = [1, 0], sizes = [1, 256], strides = [1, 1]} : vector<4x256xf32> to vector<1x256xf32>
    %599 = vector.broadcast %597 : vector<4x1xf32> to vector<4x256xf32>
    %600 = vector.broadcast %598 : vector<1x256xf32> to vector<4x256xf32>
    %601 = arith.mulf %599, %600 : vector<4x256xf32>
    %602 = arith.addf %596, %601 : vector<4x256xf32>
    %603 = vector.extract_strided_slice %4 {offsets = [0, 34], sizes = [4, 1], strides = [1, 1]} : vector<4x36xf32> to vector<4x1xf32>
    %604 = vector.extract_strided_slice %590 {offsets = [2, 0], sizes = [1, 256], strides = [1, 1]} : vector<4x256xf32> to vector<1x256xf32>
    %605 = vector.broadcast %603 : vector<4x1xf32> to vector<4x256xf32>
    %606 = vector.broadcast %604 : vector<1x256xf32> to vector<4x256xf32>
    %607 = arith.mulf %605, %606 : vector<4x256xf32>
    %608 = arith.addf %602, %607 : vector<4x256xf32>
    %609 = vector.extract_strided_slice %4 {offsets = [0, 35], sizes = [4, 1], strides = [1, 1]} : vector<4x36xf32> to vector<4x1xf32>
    %610 = vector.extract_strided_slice %590 {offsets = [3, 0], sizes = [1, 256], strides = [1, 1]} : vector<4x256xf32> to vector<1x256xf32>
    %611 = vector.broadcast %609 : vector<4x1xf32> to vector<4x256xf32>
    %612 = vector.broadcast %610 : vector<1x256xf32> to vector<4x256xf32>
    %613 = arith.mulf %611, %612 : vector<4x256xf32>
    %614 = arith.addf %608, %613 : vector<4x256xf32>
    %615 = vector.broadcast %5 : vector<4x1xf32> to vector<4x256xf32>
    %616 = arith.addf %614, %615 : vector<4x256xf32>
    %cst_30 = arith.constant 0.000000e+00 : f32
    %617 = vector.broadcast %cst_30 : f32 to vector<4x256xf32>
    %618 = arith.maximumf %616, %617 : vector<4x256xf32>
    %619 = vector.extract_strided_slice %6 {offsets = [0, 0], sizes = [16, 1], strides = [1, 1]} : vector<16x4xf32> to vector<16x1xf32>
    %620 = vector.extract_strided_slice %618 {offsets = [0, 0], sizes = [1, 256], strides = [1, 1]} : vector<4x256xf32> to vector<1x256xf32>
    %621 = vector.broadcast %619 : vector<16x1xf32> to vector<16x256xf32>
    %622 = vector.broadcast %620 : vector<1x256xf32> to vector<16x256xf32>
    %623 = arith.mulf %621, %622 : vector<16x256xf32>
    %624 = vector.extract_strided_slice %6 {offsets = [0, 1], sizes = [16, 1], strides = [1, 1]} : vector<16x4xf32> to vector<16x1xf32>
    %625 = vector.extract_strided_slice %618 {offsets = [1, 0], sizes = [1, 256], strides = [1, 1]} : vector<4x256xf32> to vector<1x256xf32>
    %626 = vector.broadcast %624 : vector<16x1xf32> to vector<16x256xf32>
    %627 = vector.broadcast %625 : vector<1x256xf32> to vector<16x256xf32>
    %628 = arith.mulf %626, %627 : vector<16x256xf32>
    %629 = arith.addf %623, %628 : vector<16x256xf32>
    %630 = vector.extract_strided_slice %6 {offsets = [0, 2], sizes = [16, 1], strides = [1, 1]} : vector<16x4xf32> to vector<16x1xf32>
    %631 = vector.extract_strided_slice %618 {offsets = [2, 0], sizes = [1, 256], strides = [1, 1]} : vector<4x256xf32> to vector<1x256xf32>
    %632 = vector.broadcast %630 : vector<16x1xf32> to vector<16x256xf32>
    %633 = vector.broadcast %631 : vector<1x256xf32> to vector<16x256xf32>
    %634 = arith.mulf %632, %633 : vector<16x256xf32>
    %635 = arith.addf %629, %634 : vector<16x256xf32>
    %636 = vector.extract_strided_slice %6 {offsets = [0, 3], sizes = [16, 1], strides = [1, 1]} : vector<16x4xf32> to vector<16x1xf32>
    %637 = vector.extract_strided_slice %618 {offsets = [3, 0], sizes = [1, 256], strides = [1, 1]} : vector<4x256xf32> to vector<1x256xf32>
    %638 = vector.broadcast %636 : vector<16x1xf32> to vector<16x256xf32>
    %639 = vector.broadcast %637 : vector<1x256xf32> to vector<16x256xf32>
    %640 = arith.mulf %638, %639 : vector<16x256xf32>
    %641 = arith.addf %635, %640 : vector<16x256xf32>
    %642 = vector.extract_strided_slice %7 {offsets = [0, 0], sizes = [16, 1], strides = [1, 1]} : vector<16x4xf32> to vector<16x1xf32>
    %643 = vector.extract_strided_slice %340 {offsets = [0, 0], sizes = [1, 256], strides = [1, 1]} : vector<4x256xf32> to vector<1x256xf32>
    %644 = vector.broadcast %642 : vector<16x1xf32> to vector<16x256xf32>
    %645 = vector.broadcast %643 : vector<1x256xf32> to vector<16x256xf32>
    %646 = arith.mulf %644, %645 : vector<16x256xf32>
    %647 = arith.addf %641, %646 : vector<16x256xf32>
    %648 = vector.extract_strided_slice %7 {offsets = [0, 1], sizes = [16, 1], strides = [1, 1]} : vector<16x4xf32> to vector<16x1xf32>
    %649 = vector.extract_strided_slice %340 {offsets = [1, 0], sizes = [1, 256], strides = [1, 1]} : vector<4x256xf32> to vector<1x256xf32>
    %650 = vector.broadcast %648 : vector<16x1xf32> to vector<16x256xf32>
    %651 = vector.broadcast %649 : vector<1x256xf32> to vector<16x256xf32>
    %652 = arith.mulf %650, %651 : vector<16x256xf32>
    %653 = arith.addf %647, %652 : vector<16x256xf32>
    %654 = vector.extract_strided_slice %7 {offsets = [0, 2], sizes = [16, 1], strides = [1, 1]} : vector<16x4xf32> to vector<16x1xf32>
    %655 = vector.extract_strided_slice %340 {offsets = [2, 0], sizes = [1, 256], strides = [1, 1]} : vector<4x256xf32> to vector<1x256xf32>
    %656 = vector.broadcast %654 : vector<16x1xf32> to vector<16x256xf32>
    %657 = vector.broadcast %655 : vector<1x256xf32> to vector<16x256xf32>
    %658 = arith.mulf %656, %657 : vector<16x256xf32>
    %659 = arith.addf %653, %658 : vector<16x256xf32>
    %660 = vector.extract_strided_slice %7 {offsets = [0, 3], sizes = [16, 1], strides = [1, 1]} : vector<16x4xf32> to vector<16x1xf32>
    %661 = vector.extract_strided_slice %340 {offsets = [3, 0], sizes = [1, 256], strides = [1, 1]} : vector<4x256xf32> to vector<1x256xf32>
    %662 = vector.broadcast %660 : vector<16x1xf32> to vector<16x256xf32>
    %663 = vector.broadcast %661 : vector<1x256xf32> to vector<16x256xf32>
    %664 = arith.mulf %662, %663 : vector<16x256xf32>
    %665 = arith.addf %659, %664 : vector<16x256xf32>
    %666 = vector.broadcast %8 : vector<16x1xf32> to vector<16x256xf32>
    %667 = arith.addf %665, %666 : vector<16x256xf32>
    %cst_31 = arith.constant 0.000000e+00 : f32
    %668 = vector.broadcast %cst_31 : f32 to vector<16x256xf32>
    %669 = arith.maximumf %667, %668 : vector<16x256xf32>
    %c16 = arith.constant 16 : index
    %c0_32 = arith.constant 0 : index
    %670 = vector.load %arg10[%c16, %c0_32] : memref<32x256xf32, #tpu.memory_space<vmem>>, vector<16x256xf32>
    tpu.vector_store %arg10[%c16, %c0_32], %669 {strides = array<i32>} : memref<32x256xf32, #tpu.memory_space<vmem>>, vector<16x256xf32>,
    return
  }
  func.func @transform_0(%arg0: i32) -> (i32, i32) {
    %c0_i32 = arith.constant 0 : i32
    %c0_i32_0 = arith.constant 0 : i32
    %c0_i32_1 = arith.constant 0 : i32
    return %c0_i32, %c0_i32_0 : i32, i32
  }
  func.func @transform_1(%arg0: i32) -> (i32, i32) {
    %c0_i32 = arith.constant 0 : i32
    %c0_i32_0 = arith.constant 0 : i32
    %c0_i32_1 = arith.constant 0 : i32
    return %c0_i32, %c0_i32_0 : i32, i32
  }
  func.func @transform_2(%arg0: i32) -> (i32, i32) {
    %c0_i32 = arith.constant 0 : i32
    %c0_i32_0 = arith.constant 0 : i32
    %c0_i32_1 = arith.constant 0 : i32
    return %c0_i32, %c0_i32_0 : i32, i32
  }
  func.func @transform_3(%arg0: i32) -> (i32, i32) {
    %c0_i32 = arith.constant 0 : i32
    %c0_i32_0 = arith.constant 0 : i32
    %c0_i32_1 = arith.constant 0 : i32
    return %c0_i32, %c0_i32_0 : i32, i32
  }
  func.func @transform_4(%arg0: i32) -> (i32, i32) {
    %c0_i32 = arith.constant 0 : i32
    %c0_i32_0 = arith.constant 0 : i32
    %c0_i32_1 = arith.constant 0 : i32
    return %c0_i32, %c0_i32_0 : i32, i32
  }
  func.func @transform_5(%arg0: i32) -> (i32, i32) {
    %c0_i32 = arith.constant 0 : i32
    %c0_i32_0 = arith.constant 0 : i32
    %c0_i32_1 = arith.constant 0 : i32
    return %c0_i32, %c0_i32_0 : i32, i32
  }
  func.func @transform_6(%arg0: i32) -> (i32, i32) {
    %c0_i32 = arith.constant 0 : i32
    %c0_i32_0 = arith.constant 0 : i32
    %c0_i32_1 = arith.constant 0 : i32
    return %c0_i32, %c0_i32_0 : i32, i32
  }
  func.func @transform_7(%arg0: i32) -> (i32, i32) {
    %c0_i32 = arith.constant 0 : i32
    %c0_i32_0 = arith.constant 0 : i32
    %c0_i32_1 = arith.constant 0 : i32
    return %c0_i32, %c0_i32_0 : i32, i32
  }
  func.func @transform_8(%arg0: i32) -> (i32, i32) {
    %c0_i32 = arith.constant 0 : i32
    %c0_i32_0 = arith.constant 0 : i32
    %c0_i32_1 = arith.constant 0 : i32
    return %c0_i32, %c0_i32_0 : i32, i32
  }
  func.func @transform_9(%arg0: i32) -> (i32, i32) {
    %c0_i32 = arith.constant 0 : i32
    %c0_i32_0 = arith.constant 0 : i32
    %c0_i32_1 = arith.constant 0 : i32
    return %c0_i32, %c0_i32_0 : i32, i32
  }
}

</mosaic_0001>

<llo_original>
// kernel: tpu_custom_call.1
$region0: #{tpu_custom_call.1}
  #allocation0 [shape = 'u32[]', space=smem, size = 0x4, offset = 0x4, fixed_abs, tag = 'smem constant byte address 0x4 - core index']
  #allocation1 [shape = 'u32[72,128]{1,0:T(1,128)}', space=vmem, size = 0x9000, scoped, tag = 'internal scratch']
  %s0 = inlined_call_operand.vmem [shape: f32[8,256], index: 0, kind: input, shape index: {}]
  %s1 = inlined_call_operand.vmem [shape: f32[9,256], index: 1, kind: input, shape index: {}]
  %s2 = inlined_call_operand.vmem [shape: f32[4,4], index: 2, kind: input, shape index: {}]
  %s3 = inlined_call_operand.vmem [shape: f32[4,1], index: 3, kind: input, shape index: {}]
  %s4 = inlined_call_operand.vmem [shape: f32[4,36], index: 4, kind: input, shape index: {}]
  %s5 = inlined_call_operand.vmem [shape: f32[4,1], index: 5, kind: input, shape index: {}]
  %s6 = inlined_call_operand.vmem [shape: f32[16,4], index: 6, kind: input, shape index: {}]
  %s7 = inlined_call_operand.vmem [shape: f32[16,4], index: 7, kind: input, shape index: {}]
  %s8 = inlined_call_operand.vmem [shape: f32[16,1], index: 8, kind: input, shape index: {}]
  %s9 = inlined_call_operand.hbm [shape: f32[32,256], index: 9, kind: output, shape index: {}]
  %s10 = sld [smem:[#allocation0]]
  $region46: #{tpu_custom_call.1} parent=0
    _
  %s12 = ssub.s32 1, %s10
  %s13 = scalar_select 0, %s12, %s10
  $region1: #{tpu_custom_call.1} parent=0
    #allocation2 [shape = 'u8[32768]{0}', space=vmem, size = 0x8000, scoped, tag = 'output window, operand 0, single buffered']
    #allocation3 [shape = 's32[1]{0}', space=sflag, size = 0x4, scoped, tag = 'scoped memory for tpu_custom_call.1']
    %14 = vsyncpa [#allocation3], 0
    // Predicated region
    $region2: #{tpu_custom_call.1} parent=1 // pred_check
      _
    $region3: #{tpu_custom_call.1} parent=1 // pred_check_branch
      %16 = sbr.rel (0) target = $region5
    $region4: #{tpu_custom_call.1} parent=1 // pred_region
      _
    $region5: #{tpu_custom_call.1} parent=1 // pred_fallthru
      _
    // Predicated region
    $region6: #{tpu_custom_call.1} parent=1 // pred_check
      _
    $region7: #{tpu_custom_call.1} parent=1 // pred_check_branch
      %18 = sbr.rel (0) target = $region9
    $region8: #{tpu_custom_call.1} parent=1 // pred_region
      _
    $region9: #{tpu_custom_call.1} parent=1 // pred_fallthru
      _
    // Predicated region
    $region10: #{tpu_custom_call.1} parent=1 // pred_check
      _
    $region11: #{tpu_custom_call.1} parent=1 // pred_check_branch
      %20 = sbr.rel (0) target = $region13
    $region12: #{tpu_custom_call.1} parent=1 // pred_region
      _
    $region13: #{tpu_custom_call.1} parent=1 // pred_fallthru
      _
    // Predicated region
    $region14: #{tpu_custom_call.1} parent=1 // pred_check
      _
    $region15: #{tpu_custom_call.1} parent=1 // pred_check_branch
      %22 = sbr.rel (0) target = $region17
    $region16: #{tpu_custom_call.1} parent=1 // pred_region
      _
    $region17: #{tpu_custom_call.1} parent=1 // pred_fallthru
      _
    // Predicated region
    $region18: #{tpu_custom_call.1} parent=1 // pred_check
      _
    $region19: #{tpu_custom_call.1} parent=1 // pred_check_branch
      %24 = sbr.rel (0) target = $region21
    $region20: #{tpu_custom_call.1} parent=1 // pred_region
      _
    $region21: #{tpu_custom_call.1} parent=1 // pred_fallthru
      _
    // Predicated region
    $region22: #{tpu_custom_call.1} parent=1 // pred_check
      _
    $region23: #{tpu_custom_call.1} parent=1 // pred_check_branch
      %26 = sbr.rel (0) target = $region25
    $region24: #{tpu_custom_call.1} parent=1 // pred_region
      _
    $region25: #{tpu_custom_call.1} parent=1 // pred_fallthru
      _
    // Predicated region
    $region26: #{tpu_custom_call.1} parent=1 // pred_check
      _
    $region27: #{tpu_custom_call.1} parent=1 // pred_check_branch
      %28 = sbr.rel (0) target = $region29
    $region28: #{tpu_custom_call.1} parent=1 // pred_region
      _
    $region29: #{tpu_custom_call.1} parent=1 // pred_fallthru
      _
    // Predicated region
    $region30: #{tpu_custom_call.1} parent=1 // pred_check
      _
    $region31: #{tpu_custom_call.1} parent=1 // pred_check_branch
      %30 = sbr.rel (0) target = $region33
    $region32: #{tpu_custom_call.1} parent=1 // pred_region
      _
    $region33: #{tpu_custom_call.1} parent=1 // pred_fallthru
      _
    // Predicated region
    $region34: #{tpu_custom_call.1} parent=1 // pred_check
      _
    $region35: #{tpu_custom_call.1} parent=1 // pred_check_branch
      %32 = sbr.rel (0) target = $region37
    $region36: #{tpu_custom_call.1} parent=1 // pred_region
      _
    $region37: #{tpu_custom_call.1} parent=1 // pred_fallthru
      _
    %v33 = vld [vmem:[%s0] sm:$0xff]
    %v34 = vld [vmem:[%s0 + $0x8] sm:$0xff]
    %v35 = vld [vmem:[%s1] sm:$0xff]
    %v36 = vld [vmem:[%s1 + $0x8] sm:$0xff]
    %v37 = vld [vmem:[%s1 + $0x10] sm:$0x1]
    %v38 = vld [vmem:[%s1 + $0x18] sm:$0x1]
    %v39 = vld [vmem:[%s2] sm:$0xf]
    %v40 = vld [vmem:[%s3] sm:$0xf]
    %v41 = vld [vmem:[%s4] sm:$0xf]
    %v42 = vld [vmem:[%s5] sm:$0xf]
    %v43 = vld [vmem:[%s6] sm:$0xff]
    %v44 = vld [vmem:[%s6 + $0x8] sm:$0xff]
    %v45 = vld [vmem:[%s7] sm:$0xff]
    %v46 = vld [vmem:[%s7 + $0x8] sm:$0xff]
    %v47 = vld [vmem:[%s8] sm:$0xff]
    %v48 = vld [vmem:[%s8 + $0x8] sm:$0xff]
    %50 = vset.pattern.permute.xlu0 0
    %51 = vperm.xlu0 %50, %v39
    %v52 = vpop.permute.xlu0 %51
    %v54 = vperm.slane %v33, 0
    %v55 = vperm.slane %v34, 0
    %v56 = vmul.f32 %v52, %v54
    %v57 = vmul.f32 %v52, %v55
    %58 = vset.pattern.permute.xlu0 1
    %59 = vperm.xlu0 %58, %v39
    %v60 = vpop.permute.xlu0 %59
    %v62 = vperm.slane %v33, 1
    %v63 = vperm.slane %v34, 1
    %v64 = vmul.f32 %v60, %v62
    %v65 = vmul.f32 %v60, %v63
    %v66 = vadd.f32 %v56, %v64
    %v67 = vadd.f32 %v57, %v65
    %68 = vset.pattern.permute.xlu0 2
    %69 = vperm.xlu0 %68, %v39
    %v70 = vpop.permute.xlu0 %69
    %v72 = vperm.slane %v33, 2
    %v73 = vperm.slane %v34, 2
    %v74 = vmul.f32 %v70, %v72
    %v75 = vmul.f32 %v70, %v73
    %v76 = vadd.f32 %v66, %v74
    %v77 = vadd.f32 %v67, %v75
    %78 = vset.pattern.permute.xlu0 3
    %79 = vperm.xlu0 %78, %v39
    %v80 = vpop.permute.xlu0 %79
    %v82 = vperm.slane %v33, 3
    %v83 = vperm.slane %v34, 3
    %v84 = vmul.f32 %v80, %v82
    %v85 = vmul.f32 %v80, %v83
    %v86 = vadd.f32 %v76, %v84
    %v87 = vadd.f32 %v77, %v85
    %89 = vset.pattern.permute.xlu0 0
    %90 = vperm.xlu0 %89, %v40
    %v91 = vpop.permute.xlu0 %90
    %v93 = vadd.f32 %v86, %v91
    %v94 = vadd.f32 %v87, %v91
    %v95 = vmax.f32 %v93, 0.0
    %v96 = vmax.f32 %v94, 0.0
    %97 = vrot.lane.b32.xlu0 %v95, 17
    %v98 = vpop.permute.xlu0 %97
    %99 = vrot.lane.b32.xlu0 %v96, 17
    %v100 = vpop.permute.xlu0 %99
    %v101 = vlaneseq
    %v102 = vand.u32 %v101, 127
    %vm103 = vcmp.lt.s32.totalorder %v102, 17
    %v104 = vsel %vm103, %v98, %v100
    %v105 = vsel %vm103, %v100, %v98
    %v106 = vperm.slane %v35, 0
    %v107 = vperm.slane %v36, 0
    %v108 = vmul.f32 %v105, %v106
    %v109 = vmul.f32 %v104, %v107
    %111 = vset.pattern.permute.xlu0 0
    %112 = vperm.xlu0 %111, %v41
    %v113 = vpop.permute.xlu0 %112
    %v115 = vperm.slane %v108, 0
    %v116 = vperm.slane %v109, 0
    %v117 = vmul.f32 %v113, %v115
    %v118 = vmul.f32 %v113, %v116
    %119 = vset.pattern.permute.xlu0 1
    %120 = vperm.xlu0 %119, %v41
    %v121 = vpop.permute.xlu0 %120
    %v123 = vperm.slane %v108, 1
    %v124 = vperm.slane %v109, 1
    %v125 = vmul.f32 %v121, %v123
    %v126 = vmul.f32 %v121, %v124
    %v127 = vadd.f32 %v117, %v125
    %v128 = vadd.f32 %v118, %v126
    %129 = vset.pattern.permute.xlu0 2
    %130 = vperm.xlu0 %129, %v41
    %v131 = vpop.permute.xlu0 %130
    %v133 = vperm.slane %v108, 2
    %v134 = vperm.slane %v109, 2
    %v135 = vmul.f32 %v131, %v133
    %v136 = vmul.f32 %v131, %v134
    %v137 = vadd.f32 %v127, %v135
    %v138 = vadd.f32 %v128, %v136
    %139 = vset.pattern.permute.xlu0 3
    %140 = vperm.xlu0 %139, %v41
    %v141 = vpop.permute.xlu0 %140
    %v143 = vperm.slane %v108, 3
    %v144 = vperm.slane %v109, 3
    %v145 = vmul.f32 %v141, %v143
    %v146 = vmul.f32 %v141, %v144
    %v147 = vadd.f32 %v137, %v145
    %v148 = vadd.f32 %v138, %v146
    %149 = vrot.lane.b32.xlu0 %v95, 16
    %v150 = vpop.permute.xlu0 %149
    %151 = vrot.lane.b32.xlu0 %v96, 16
    %v152 = vpop.permute.xlu0 %151
    %vm153 = vcmp.lt.s32.totalorder %v102, 16
    %v154 = vsel %vm153, %v150, %v152
    %v155 = vsel %vm153, %v152, %v150
    %v156 = vperm.slane %v35, 1
    %v157 = vperm.slane %v36, 1
    %v158 = vmul.f32 %v155, %v156
    %v159 = vmul.f32 %v154, %v157
    %160 = vset.pattern.permute.xlu0 4
    %161 = vperm.xlu0 %160, %v41
    %v162 = vpop.permute.xlu0 %161
    %v164 = vperm.slane %v158, 0
    %v165 = vperm.slane %v159, 0
    %v166 = vmul.f32 %v162, %v164
    %v167 = vmul.f32 %v162, %v165
    %v168 = vadd.f32 %v147, %v166
    %v169 = vadd.f32 %v148, %v167
    %170 = vset.pattern.permute.xlu0 5
    %171 = vperm.xlu0 %170, %v41
    %v172 = vpop.permute.xlu0 %171
    %v174 = vperm.slane %v158, 1
    %v175 = vperm.slane %v159, 1
    %v176 = vmul.f32 %v172, %v174
    %v177 = vmul.f32 %v172, %v175
    %v178 = vadd.f32 %v168, %v176
    %v179 = vadd.f32 %v169, %v177
    %180 = vset.pattern.permute.xlu0 6
    %181 = vperm.xlu0 %180, %v41
    %v182 = vpop.permute.xlu0 %181
    %v184 = vperm.slane %v158, 2
    %v185 = vperm.slane %v159, 2
    %v186 = vmul.f32 %v182, %v184
    %v187 = vmul.f32 %v182, %v185
    %v188 = vadd.f32 %v178, %v186
    %v189 = vadd.f32 %v179, %v187
    %190 = vset.pattern.permute.xlu0 7
    %191 = vperm.xlu0 %190, %v41
    %v192 = vpop.permute.xlu0 %191
    %v194 = vperm.slane %v158, 3
    %v195 = vperm.slane %v159, 3
    %v196 = vmul.f32 %v192, %v194
    %v197 = vmul.f32 %v192, %v195
    %v198 = vadd.f32 %v188, %v196
    %v199 = vadd.f32 %v189, %v197
    %200 = vrot.lane.b32.xlu0 %v95, 15
    %v201 = vpop.permute.xlu0 %200
    %202 = vrot.lane.b32.xlu0 %v96, 15
    %v203 = vpop.permute.xlu0 %202
    %vm204 = vcmp.lt.s32.totalorder %v102, 15
    %v205 = vsel %vm204, %v201, %v203
    %v206 = vsel %vm204, %v203, %v201
    %v207 = vperm.slane %v35, 2
    %v208 = vperm.slane %v36, 2
    %v209 = vmul.f32 %v206, %v207
    %v210 = vmul.f32 %v205, %v208
    %211 = vset.pattern.permute.xlu0 8
    %212 = vperm.xlu0 %211, %v41
    %v213 = vpop.permute.xlu0 %212
    %v215 = vperm.slane %v209, 0
    %v216 = vperm.slane %v210, 0
    %v217 = vmul.f32 %v213, %v215
    %v218 = vmul.f32 %v213, %v216
    %v219 = vadd.f32 %v198, %v217
    %v220 = vadd.f32 %v199, %v218
    %221 = vset.pattern.permute.xlu0 9
    %222 = vperm.xlu0 %221, %v41
    %v223 = vpop.permute.xlu0 %222
    %v225 = vperm.slane %v209, 1
    %v226 = vperm.slane %v210, 1
    %v227 = vmul.f32 %v223, %v225
    %v228 = vmul.f32 %v223, %v226
    %v229 = vadd.f32 %v219, %v227
    %v230 = vadd.f32 %v220, %v228
    %231 = vset.pattern.permute.xlu0 10
    %232 = vperm.xlu0 %231, %v41
    %v233 = vpop.permute.xlu0 %232
    %v235 = vperm.slane %v209, 2
    %v236 = vperm.slane %v210, 2
    %v237 = vmul.f32 %v233, %v235
    %v238 = vmul.f32 %v233, %v236
    %v239 = vadd.f32 %v229, %v237
    %v240 = vadd.f32 %v230, %v238
    %241 = vset.pattern.permute.xlu0 11
    %242 = vperm.xlu0 %241, %v41
    %v243 = vpop.permute.xlu0 %242
    %v245 = vperm.slane %v209, 3
    %v246 = vperm.slane %v210, 3
    %v247 = vmul.f32 %v243, %v245
    %v248 = vmul.f32 %v243, %v246
    %v249 = vadd.f32 %v239, %v247
    %v250 = vadd.f32 %v240, %v248
    %251 = vrot.lane.b32.xlu0 %v95, 1
    %v252 = vpop.permute.xlu0 %251
    %253 = vrot.lane.b32.xlu0 %v96, 1
    %v254 = vpop.permute.xlu0 %253
    %vm255 = vcmp.lt.s32.totalorder %v102, 1
    %v256 = vsel %vm255, %v252, %v254
    %v257 = vsel %vm255, %v254, %v252
    %v258 = vperm.slane %v35, 3
    %v259 = vperm.slane %v36, 3
    %v260 = vmul.f32 %v257, %v258
    %v261 = vmul.f32 %v256, %v259
    %262 = vset.pattern.permute.xlu0 12
    %263 = vperm.xlu0 %262, %v41
    %v264 = vpop.permute.xlu0 %263
    %v266 = vperm.slane %v260, 0
    %v267 = vperm.slane %v261, 0
    %v268 = vmul.f32 %v264, %v266
    %v269 = vmul.f32 %v264, %v267
    %v270 = vadd.f32 %v249, %v268
    %v271 = vadd.f32 %v250, %v269
    %272 = vset.pattern.permute.xlu0 13
    %273 = vperm.xlu0 %272, %v41
    %v274 = vpop.permute.xlu0 %273
    %v276 = vperm.slane %v260, 1
    %v277 = vperm.slane %v261, 1
    %v278 = vmul.f32 %v274, %v276
    %v279 = vmul.f32 %v274, %v277
    %v280 = vadd.f32 %v270, %v278
    %v281 = vadd.f32 %v271, %v279
    %282 = vset.pattern.permute.xlu0 14
    %283 = vperm.xlu0 %282, %v41
    %v284 = vpop.permute.xlu0 %283
    %v286 = vperm.slane %v260, 2
    %v287 = vperm.slane %v261, 2
    %v288 = vmul.f32 %v284, %v286
    %v289 = vmul.f32 %v284, %v287
    %v290 = vadd.f32 %v280, %v288
    %v291 = vadd.f32 %v281, %v289
    %292 = vset.pattern.permute.xlu0 15
    %293 = vperm.xlu0 %292, %v41
    %v294 = vpop.permute.xlu0 %293
    %v296 = vperm.slane %v260, 3
    %v297 = vperm.slane %v261, 3
    %v298 = vmul.f32 %v294, %v296
    %v299 = vmul.f32 %v294, %v297
    %v300 = vadd.f32 %v290, %v298
    %v301 = vadd.f32 %v291, %v299
    %302 = vset.pattern.permute.xlu0 16
    %303 = vperm.xlu0 %302, %v41
    %v304 = vpop.permute.xlu0 %303
    %v306 = vperm.slane %v95, 0
    %v307 = vperm.slane %v96, 0
    %v308 = vmul.f32 %v304, %v306
    %v309 = vmul.f32 %v304, %v307
    %v310 = vadd.f32 %v300, %v308
    %v311 = vadd.f32 %v301, %v309
    %312 = vset.pattern.permute.xlu0 17
    %313 = vperm.xlu0 %312, %v41
    %v314 = vpop.permute.xlu0 %313
    %v316 = vperm.slane %v95, 1
    %v317 = vperm.slane %v96, 1
    %v318 = vmul.f32 %v314, %v316
    %v319 = vmul.f32 %v314, %v317
    %v320 = vadd.f32 %v310, %v318
    %v321 = vadd.f32 %v311, %v319
    %322 = vset.pattern.permute.xlu0 18
    %323 = vperm.xlu0 %322, %v41
    %v324 = vpop.permute.xlu0 %323
    %v326 = vperm.slane %v95, 2
    %v327 = vperm.slane %v96, 2
    %v328 = vmul.f32 %v324, %v326
    %v329 = vmul.f32 %v324, %v327
    %v330 = vadd.f32 %v320, %v328
    %v331 = vadd.f32 %v321, %v329
    %332 = vset.pattern.permute.xlu0 19
    %333 = vperm.xlu0 %332, %v41
    %v334 = vpop.permute.xlu0 %333
    %v336 = vperm.slane %v95, 3
    %v337 = vperm.slane %v96, 3
    %v338 = vmul.f32 %v334, %v336
    %v339 = vmul.f32 %v334, %v337
    %v340 = vadd.f32 %v330, %v338
    %v341 = vadd.f32 %v331, %v339
    %342 = vrot.lane.b32.xlu0 %v95, 127
    %v343 = vpop.permute.xlu0 %342
    %344 = vrot.lane.b32.xlu0 %v96, 127
    %v345 = vpop.permute.xlu0 %344
    %vm346 = vcmp.lt.s32.totalorder %v102, 127
    %v347 = vsel %vm346, %v343, %v345
    %v348 = vsel %vm346, %v345, %v343
    %v349 = vperm.slane %v35, 5
    %v350 = vperm.slane %v36, 5
    %v351 = vmul.f32 %v347, %v349
    %v352 = vmul.f32 %v348, %v350
    %353 = vset.pattern.permute.xlu0 20
    %354 = vperm.xlu0 %353, %v41
    %v355 = vpop.permute.xlu0 %354
    %v357 = vperm.slane %v351, 0
    %v358 = vperm.slane %v352, 0
    %v359 = vmul.f32 %v355, %v357
    %v360 = vmul.f32 %v355, %v358
    %v361 = vadd.f32 %v340, %v359
    %v362 = vadd.f32 %v341, %v360
    %363 = vset.pattern.permute.xlu0 21
    %364 = vperm.xlu0 %363, %v41
    %v365 = vpop.permute.xlu0 %364
    %v367 = vperm.slane %v351, 1
    %v368 = vperm.slane %v352, 1
    %v369 = vmul.f32 %v365, %v367
    %v370 = vmul.f32 %v365, %v368
    %v371 = vadd.f32 %v361, %v369
    %v372 = vadd.f32 %v362, %v370
    %373 = vset.pattern.permute.xlu0 22
    %374 = vperm.xlu0 %373, %v41
    %v375 = vpop.permute.xlu0 %374
    %v377 = vperm.slane %v351, 2
    %v378 = vperm.slane %v352, 2
    %v379 = vmul.f32 %v375, %v377
    %v380 = vmul.f32 %v375, %v378
    %v381 = vadd.f32 %v371, %v379
    %v382 = vadd.f32 %v372, %v380
    %383 = vset.pattern.permute.xlu0 23
    %384 = vperm.xlu0 %383, %v41
    %v385 = vpop.permute.xlu0 %384
    %v387 = vperm.slane %v351, 3
    %v388 = vperm.slane %v352, 3
    %v389 = vmul.f32 %v385, %v387
    %v390 = vmul.f32 %v385, %v388
    %v391 = vadd.f32 %v381, %v389
    %v392 = vadd.f32 %v382, %v390
    %393 = vrot.lane.b32.xlu0 %v95, 113
    %v394 = vpop.permute.xlu0 %393
    %395 = vrot.lane.b32.xlu0 %v96, 113
    %v396 = vpop.permute.xlu0 %395
    %vm397 = vcmp.lt.s32.totalorder %v102, 113
    %v398 = vsel %vm397, %v394, %v396
    %v399 = vsel %vm397, %v396, %v394
    %v400 = vperm.slane %v35, 6
    %v401 = vperm.slane %v36, 6
    %v402 = vmul.f32 %v398, %v400
    %v403 = vmul.f32 %v399, %v401
    %404 = vset.pattern.permute.xlu0 24
    %405 = vperm.xlu0 %404, %v41
    %v406 = vpop.permute.xlu0 %405
    %v408 = vperm.slane %v402, 0
    %v409 = vperm.slane %v403, 0
    %v410 = vmul.f32 %v406, %v408
    %v411 = vmul.f32 %v406, %v409
    %v412 = vadd.f32 %v391, %v410
    %v413 = vadd.f32 %v392, %v411
    %414 = vset.pattern.permute.xlu0 25
    %415 = vperm.xlu0 %414, %v41
    %v416 = vpop.permute.xlu0 %415
    %v418 = vperm.slane %v402, 1
    %v419 = vperm.slane %v403, 1
    %v420 = vmul.f32 %v416, %v418
    %v421 = vmul.f32 %v416, %v419
    %v422 = vadd.f32 %v412, %v420
    %v423 = vadd.f32 %v413, %v421
    %424 = vset.pattern.permute.xlu0 26
    %425 = vperm.xlu0 %424, %v41
    %v426 = vpop.permute.xlu0 %425
    %v428 = vperm.slane %v402, 2
    %v429 = vperm.slane %v403, 2
    %v430 = vmul.f32 %v426, %v428
    %v431 = vmul.f32 %v426, %v429
    %v432 = vadd.f32 %v422, %v430
    %v433 = vadd.f32 %v423, %v431
    %434 = vset.pattern.permute.xlu0 27
    %435 = vperm.xlu0 %434, %v41
    %v436 = vpop.permute.xlu0 %435
    %v438 = vperm.slane %v402, 3
    %v439 = vperm.slane %v403, 3
    %v440 = vmul.f32 %v436, %v438
    %v441 = vmul.f32 %v436, %v439
    %v442 = vadd.f32 %v432, %v440
    %v443 = vadd.f32 %v433, %v441
    %444 = vrot.lane.b32.xlu0 %v95, 112
    %v445 = vpop.permute.xlu0 %444
    %446 = vrot.lane.b32.xlu0 %v96, 112
    %v447 = vpop.permute.xlu0 %446
    %vm448 = vcmp.lt.s32.totalorder %v102, 112
    %v449 = vsel %vm448, %v445, %v447
    %v450 = vsel %vm448, %v447, %v445
    %v451 = vperm.slane %v35, 7
    %v452 = vperm.slane %v36, 7
    %v453 = vmul.f32 %v449, %v451
    %v454 = vmul.f32 %v450, %v452
    %455 = vset.pattern.permute.xlu0 28
    %456 = vperm.xlu0 %455, %v41
    %v457 = vpop.permute.xlu0 %456
    %v459 = vperm.slane %v453, 0
    %v460 = vperm.slane %v454, 0
    %v461 = vmul.f32 %v457, %v459
    %v462 = vmul.f32 %v457, %v460
    %v463 = vadd.f32 %v442, %v461
    %v464 = vadd.f32 %v443, %v462
    %465 = vset.pattern.permute.xlu0 29
    %466 = vperm.xlu0 %465, %v41
    %v467 = vpop.permute.xlu0 %466
    %v469 = vperm.slane %v453, 1
    %v470 = vperm.slane %v454, 1
    %v471 = vmul.f32 %v467, %v469
    %v472 = vmul.f32 %v467, %v470
    %v473 = vadd.f32 %v463, %v471
    %v474 = vadd.f32 %v464, %v472
    %475 = vset.pattern.permute.xlu0 30
    %476 = vperm.xlu0 %475, %v41
    %v477 = vpop.permute.xlu0 %476
    %v479 = vperm.slane %v453, 2
    %v480 = vperm.slane %v454, 2
    %v481 = vmul.f32 %v477, %v479
    %v482 = vmul.f32 %v477, %v480
    %v483 = vadd.f32 %v473, %v481
    %v484 = vadd.f32 %v474, %v482
    %485 = vset.pattern.permute.xlu0 31
    %486 = vperm.xlu0 %485, %v41
    %v487 = vpop.permute.xlu0 %486
    %v489 = vperm.slane %v453, 3
    %v490 = vperm.slane %v454, 3
    %v491 = vmul.f32 %v487, %v489
    %v492 = vmul.f32 %v487, %v490
    %v493 = vadd.f32 %v483, %v491
    %v494 = vadd.f32 %v484, %v492
    %495 = vrot.lane.b32.xlu0 %v95, 111
    %v496 = vpop.permute.xlu0 %495
    %497 = vrot.lane.b32.xlu0 %v96, 111
    %v498 = vpop.permute.xlu0 %497
    %vm499 = vcmp.lt.s32.totalorder %v102, 111
    %v500 = vsel %vm499, %v496, %v498
    %v501 = vsel %vm499, %v498, %v496
    %v502 = vperm.slane %v37, 0
    %v503 = vperm.slane %v38, 0
    %v504 = vmul.f32 %v500, %v502
    %v505 = vmul.f32 %v501, %v503
    %506 = vset.pattern.permute.xlu0 32
    %507 = vperm.xlu0 %506, %v41
    %v508 = vpop.permute.xlu0 %507
    %v510 = vperm.slane %v504, 0
    %v511 = vperm.slane %v505, 0
    %v512 = vmul.f32 %v508, %v510
    %v513 = vmul.f32 %v508, %v511
    %v514 = vadd.f32 %v493, %v512
    %v515 = vadd.f32 %v494, %v513
    %516 = vset.pattern.permute.xlu0 33
    %517 = vperm.xlu0 %516, %v41
    %v518 = vpop.permute.xlu0 %517
    %v520 = vperm.slane %v504, 1
    %v521 = vperm.slane %v505, 1
    %v522 = vmul.f32 %v518, %v520
    %v523 = vmul.f32 %v518, %v521
    %v524 = vadd.f32 %v514, %v522
    %v525 = vadd.f32 %v515, %v523
    %526 = vset.pattern.permute.xlu0 34
    %527 = vperm.xlu0 %526, %v41
    %v528 = vpop.permute.xlu0 %527
    %v530 = vperm.slane %v504, 2
    %v531 = vperm.slane %v505, 2
    %v532 = vmul.f32 %v528, %v530
    %v533 = vmul.f32 %v528, %v531
    %v534 = vadd.f32 %v524, %v532
    %v535 = vadd.f32 %v525, %v533
    %536 = vset.pattern.permute.xlu0 35
    %537 = vperm.xlu0 %536, %v41
    %v538 = vpop.permute.xlu0 %537
    %v540 = vperm.slane %v504, 3
    %v541 = vperm.slane %v505, 3
    %v542 = vmul.f32 %v538, %v540
    %v543 = vmul.f32 %v538, %v541
    %v544 = vadd.f32 %v534, %v542
    %v545 = vadd.f32 %v535, %v543
    %547 = vset.pattern.permute.xlu0 0
    %548 = vperm.xlu0 %547, %v42
    %v549 = vpop.permute.xlu0 %548
    %v551 = vadd.f32 %v544, %v549
    %v552 = vadd.f32 %v545, %v549
    %v553 = vmax.f32 %v551, 0.0
    %v554 = vmax.f32 %v552, 0.0
    %556 = vset.pattern.permute.xlu0 0
    %557 = vperm.xlu0 %556, %v43
    %v558 = vpop.permute.xlu0 %557
    %561 = vset.pattern.permute.xlu0 0
    %562 = vperm.xlu0 %561, %v44
    %v563 = vpop.permute.xlu0 %562
    %v565 = vperm.slane %v553, 0
    %v566 = vperm.slane %v554, 0
    %v567 = vmul.f32 %v558, %v565
    %v568 = vmul.f32 %v558, %v566
    %v569 = vmul.f32 %v563, %v565
    %v570 = vmul.f32 %v563, %v566
    %571 = vset.pattern.permute.xlu0 1
    %572 = vperm.xlu0 %571, %v43
    %v573 = vpop.permute.xlu0 %572
    %575 = vset.pattern.permute.xlu0 1
    %576 = vperm.xlu0 %575, %v44
    %v577 = vpop.permute.xlu0 %576
    %v579 = vperm.slane %v553, 1
    %v580 = vperm.slane %v554, 1
    %v581 = vmul.f32 %v573, %v579
    %v582 = vmul.f32 %v573, %v580
    %v583 = vmul.f32 %v577, %v579
    %v584 = vmul.f32 %v577, %v580
    %v585 = vadd.f32 %v567, %v581
    %v586 = vadd.f32 %v568, %v582
    %v587 = vadd.f32 %v569, %v583
    %v588 = vadd.f32 %v570, %v584
    %589 = vset.pattern.permute.xlu0 2
    %590 = vperm.xlu0 %589, %v43
    %v591 = vpop.permute.xlu0 %590
    %593 = vset.pattern.permute.xlu0 2
    %594 = vperm.xlu0 %593, %v44
    %v595 = vpop.permute.xlu0 %594
    %v597 = vperm.slane %v553, 2
    %v598 = vperm.slane %v554, 2
    %v599 = vmul.f32 %v591, %v597
    %v600 = vmul.f32 %v591, %v598
    %v601 = vmul.f32 %v595, %v597
    %v602 = vmul.f32 %v595, %v598
    %v603 = vadd.f32 %v585, %v599
    %v604 = vadd.f32 %v586, %v600
    %v605 = vadd.f32 %v587, %v601
    %v606 = vadd.f32 %v588, %v602
    %607 = vset.pattern.permute.xlu0 3
    %608 = vperm.xlu0 %607, %v43
    %v609 = vpop.permute.xlu0 %608
    %611 = vset.pattern.permute.xlu0 3
    %612 = vperm.xlu0 %611, %v44
    %v613 = vpop.permute.xlu0 %612
    %v615 = vperm.slane %v553, 3
    %v616 = vperm.slane %v554, 3
    %v617 = vmul.f32 %v609, %v615
    %v618 = vmul.f32 %v609, %v616
    %v619 = vmul.f32 %v613, %v615
    %v620 = vmul.f32 %v613, %v616
    %v621 = vadd.f32 %v603, %v617
    %v622 = vadd.f32 %v604, %v618
    %v623 = vadd.f32 %v605, %v619
    %v624 = vadd.f32 %v606, %v620
    %626 = vset.pattern.permute.xlu0 0
    %627 = vperm.xlu0 %626, %v45
    %v628 = vpop.permute.xlu0 %627
    %631 = vset.pattern.permute.xlu0 0
    %632 = vperm.xlu0 %631, %v46
    %v633 = vpop.permute.xlu0 %632
    %v635 = vmul.f32 %v628, %v54
    %v636 = vmul.f32 %v628, %v55
    %v637 = vmul.f32 %v633, %v54
    %v638 = vmul.f32 %v633, %v55
    %v639 = vadd.f32 %v621, %v635
    %v640 = vadd.f32 %v622, %v636
    %v641 = vadd.f32 %v623, %v637
    %v642 = vadd.f32 %v624, %v638
    %643 = vset.pattern.permute.xlu0 1
    %644 = vperm.xlu0 %643, %v45
    %v645 = vpop.permute.xlu0 %644
    %647 = vset.pattern.permute.xlu0 1
    %648 = vperm.xlu0 %647, %v46
    %v649 = vpop.permute.xlu0 %648
    %v651 = vmul.f32 %v645, %v62
    %v652 = vmul.f32 %v645, %v63
    %v653 = vmul.f32 %v649, %v62
    %v654 = vmul.f32 %v649, %v63
    %v655 = vadd.f32 %v639, %v651
    %v656 = vadd.f32 %v640, %v652
    %v657 = vadd.f32 %v641, %v653
    %v658 = vadd.f32 %v642, %v654
    %659 = vset.pattern.permute.xlu0 2
    %660 = vperm.xlu0 %659, %v45
    %v661 = vpop.permute.xlu0 %660
    %663 = vset.pattern.permute.xlu0 2
    %664 = vperm.xlu0 %663, %v46
    %v665 = vpop.permute.xlu0 %664
    %v667 = vmul.f32 %v661, %v72
    %v668 = vmul.f32 %v661, %v73
    %v669 = vmul.f32 %v665, %v72
    %v670 = vmul.f32 %v665, %v73
    %v671 = vadd.f32 %v655, %v667
    %v672 = vadd.f32 %v656, %v668
    %v673 = vadd.f32 %v657, %v669
    %v674 = vadd.f32 %v658, %v670
    %675 = vset.pattern.permute.xlu0 3
    %676 = vperm.xlu0 %675, %v45
    %v677 = vpop.permute.xlu0 %676
    %679 = vset.pattern.permute.xlu0 3
    %680 = vperm.xlu0 %679, %v46
    %v681 = vpop.permute.xlu0 %680
    %v683 = vmul.f32 %v677, %v82
    %v684 = vmul.f32 %v677, %v83
    %v685 = vmul.f32 %v681, %v82
    %v686 = vmul.f32 %v681, %v83
    %v687 = vadd.f32 %v671, %v683
    %v688 = vadd.f32 %v672, %v684
    %v689 = vadd.f32 %v673, %v685
    %v690 = vadd.f32 %v674, %v686
    %692 = vset.pattern.permute.xlu0 0
    %693 = vperm.xlu0 %692, %v47
    %v694 = vpop.permute.xlu0 %693
    %697 = vset.pattern.permute.xlu0 0
    %698 = vperm.xlu0 %697, %v48
    %v699 = vpop.permute.xlu0 %698
    %v701 = vadd.f32 %v687, %v694
    %v702 = vadd.f32 %v688, %v694
    %v703 = vadd.f32 %v689, %v699
    %v704 = vadd.f32 %v690, %v699
    %v705 = vmax.f32 %v701, 0.0
    %v706 = vmax.f32 %v702, 0.0
    %v707 = vmax.f32 %v703, 0.0
    %v708 = vmax.f32 %v704, 0.0
    %709 = vst [vmem:[#allocation2] sm:$0xff] %v705
    %710 = vst [vmem:[#allocation2 + $0x8] sm:$0xff] %v706
    %711 = vst [vmem:[#allocation2 + $0x10] sm:$0xff] %v707
    %712 = vst [vmem:[#allocation2 + $0x18] sm:$0xff] %v708
    %v713 = vperm.slane %v33, 4
    %v714 = vperm.slane %v34, 4
    %v715 = vmul.f32 %v52, %v713
    %v716 = vmul.f32 %v52, %v714
    %v717 = vperm.slane %v33, 5
    %v718 = vperm.slane %v34, 5
    %v719 = vmul.f32 %v60, %v717
    %v720 = vmul.f32 %v60, %v718
    %v721 = vadd.f32 %v715, %v719
    %v722 = vadd.f32 %v716, %v720
    %v723 = vperm.slane %v33, 6
    %v724 = vperm.slane %v34, 6
    %v725 = vmul.f32 %v70, %v723
    %v726 = vmul.f32 %v70, %v724
    %v727 = vadd.f32 %v721, %v725
    %v728 = vadd.f32 %v722, %v726
    %v729 = vperm.slane %v33, 7
    %v730 = vperm.slane %v34, 7
    %v731 = vmul.f32 %v80, %v729
    %v732 = vmul.f32 %v80, %v730
    %v733 = vadd.f32 %v727, %v731
    %v734 = vadd.f32 %v728, %v732
    %v735 = vadd.f32 %v733, %v91
    %v736 = vadd.f32 %v734, %v91
    %v737 = vmax.f32 %v735, 0.0
    %v738 = vmax.f32 %v736, 0.0
    %739 = vrot.lane.b32.xlu0 %v737, 17
    %v740 = vpop.permute.xlu0 %739
    %741 = vrot.lane.b32.xlu0 %v738, 17
    %v742 = vpop.permute.xlu0 %741
    %v743 = vsel %vm103, %v740, %v742
    %v744 = vsel %vm103, %v742, %v740
    %v745 = vmul.f32 %v744, %v106
    %v746 = vmul.f32 %v743, %v107
    %v747 = vperm.slane %v745, 0
    %v748 = vperm.slane %v746, 0
    %v749 = vmul.f32 %v113, %v747
    %v750 = vmul.f32 %v113, %v748
    %v751 = vperm.slane %v745, 1
    %v752 = vperm.slane %v746, 1
    %v753 = vmul.f32 %v121, %v751
    %v754 = vmul.f32 %v121, %v752
    %v755 = vadd.f32 %v749, %v753
    %v756 = vadd.f32 %v750, %v754
    %v757 = vperm.slane %v745, 2
    %v758 = vperm.slane %v746, 2
    %v759 = vmul.f32 %v131, %v757
    %v760 = vmul.f32 %v131, %v758
    %v761 = vadd.f32 %v755, %v759
    %v762 = vadd.f32 %v756, %v760
    %v763 = vperm.slane %v745, 3
    %v764 = vperm.slane %v746, 3
    %v765 = vmul.f32 %v141, %v763
    %v766 = vmul.f32 %v141, %v764
    %v767 = vadd.f32 %v761, %v765
    %v768 = vadd.f32 %v762, %v766
    %769 = vrot.lane.b32.xlu0 %v737, 16
    %v770 = vpop.permute.xlu0 %769
    %771 = vrot.lane.b32.xlu0 %v738, 16
    %v772 = vpop.permute.xlu0 %771
    %v773 = vsel %vm153, %v770, %v772
    %v774 = vsel %vm153, %v772, %v770
    %v775 = vmul.f32 %v774, %v156
    %v776 = vmul.f32 %v773, %v157
    %v777 = vperm.slane %v775, 0
    %v778 = vperm.slane %v776, 0
    %v779 = vmul.f32 %v162, %v777
    %v780 = vmul.f32 %v162, %v778
    %v781 = vadd.f32 %v767, %v779
    %v782 = vadd.f32 %v768, %v780
    %v783 = vperm.slane %v775, 1
    %v784 = vperm.slane %v776, 1
    %v785 = vmul.f32 %v172, %v783
    %v786 = vmul.f32 %v172, %v784
    %v787 = vadd.f32 %v781, %v785
    %v788 = vadd.f32 %v782, %v786
    %v789 = vperm.slane %v775, 2
    %v790 = vperm.slane %v776, 2
    %v791 = vmul.f32 %v182, %v789
    %v792 = vmul.f32 %v182, %v790
    %v793 = vadd.f32 %v787, %v791
    %v794 = vadd.f32 %v788, %v792
    %v795 = vperm.slane %v775, 3
    %v796 = vperm.slane %v776, 3
    %v797 = vmul.f32 %v192, %v795
    %v798 = vmul.f32 %v192, %v796
    %v799 = vadd.f32 %v793, %v797
    %v800 = vadd.f32 %v794, %v798
    %801 = vrot.lane.b32.xlu0 %v737, 15
    %v802 = vpop.permute.xlu0 %801
    %803 = vrot.lane.b32.xlu0 %v738, 15
    %v804 = vpop.permute.xlu0 %803
    %v805 = vsel %vm204, %v802, %v804
    %v806 = vsel %vm204, %v804, %v802
    %v807 = vmul.f32 %v806, %v207
    %v808 = vmul.f32 %v805, %v208
    %v809 = vperm.slane %v807, 0
    %v810 = vperm.slane %v808, 0
    %v811 = vmul.f32 %v213, %v809
    %v812 = vmul.f32 %v213, %v810
    %v813 = vadd.f32 %v799, %v811
    %v814 = vadd.f32 %v800, %v812
    %v815 = vperm.slane %v807, 1
    %v816 = vperm.slane %v808, 1
    %v817 = vmul.f32 %v223, %v815
    %v818 = vmul.f32 %v223, %v816
    %v819 = vadd.f32 %v813, %v817
    %v820 = vadd.f32 %v814, %v818
    %v821 = vperm.slane %v807, 2
    %v822 = vperm.slane %v808, 2
    %v823 = vmul.f32 %v233, %v821
    %v824 = vmul.f32 %v233, %v822
    %v825 = vadd.f32 %v819, %v823
    %v826 = vadd.f32 %v820, %v824
    %v827 = vperm.slane %v807, 3
    %v828 = vperm.slane %v808, 3
    %v829 = vmul.f32 %v243, %v827
    %v830 = vmul.f32 %v243, %v828
    %v831 = vadd.f32 %v825, %v829
    %v832 = vadd.f32 %v826, %v830
    %833 = vrot.lane.b32.xlu0 %v737, 1
    %v834 = vpop.permute.xlu0 %833
    %835 = vrot.lane.b32.xlu0 %v738, 1
    %v836 = vpop.permute.xlu0 %835
    %v837 = vsel %vm255, %v834, %v836
    %v838 = vsel %vm255, %v836, %v834
    %v839 = vmul.f32 %v838, %v258
    %v840 = vmul.f32 %v837, %v259
    %v841 = vperm.slane %v839, 0
    %v842 = vperm.slane %v840, 0
    %v843 = vmul.f32 %v264, %v841
    %v844 = vmul.f32 %v264, %v842
    %v845 = vadd.f32 %v831, %v843
    %v846 = vadd.f32 %v832, %v844
    %v847 = vperm.slane %v839, 1
    %v848 = vperm.slane %v840, 1
    %v849 = vmul.f32 %v274, %v847
    %v850 = vmul.f32 %v274, %v848
    %v851 = vadd.f32 %v845, %v849
    %v852 = vadd.f32 %v846, %v850
    %v853 = vperm.slane %v839, 2
    %v854 = vperm.slane %v840, 2
    %v855 = vmul.f32 %v284, %v853
    %v856 = vmul.f32 %v284, %v854
    %v857 = vadd.f32 %v851, %v855
    %v858 = vadd.f32 %v852, %v856
    %v859 = vperm.slane %v839, 3
    %v860 = vperm.slane %v840, 3
    %v861 = vmul.f32 %v294, %v859
    %v862 = vmul.f32 %v294, %v860
    %v863 = vadd.f32 %v857, %v861
    %v864 = vadd.f32 %v858, %v862
    %v865 = vperm.slane %v737, 0
    %v866 = vperm.slane %v738, 0
    %v867 = vmul.f32 %v304, %v865
    %v868 = vmul.f32 %v304, %v866
    %v869 = vadd.f32 %v863, %v867
    %v870 = vadd.f32 %v864, %v868
    %v871 = vperm.slane %v737, 1
    %v872 = vperm.slane %v738, 1
    %v873 = vmul.f32 %v314, %v871
    %v874 = vmul.f32 %v314, %v872
    %v875 = vadd.f32 %v869, %v873
    %v876 = vadd.f32 %v870, %v874
    %v877 = vperm.slane %v737, 2
    %v878 = vperm.slane %v738, 2
    %v879 = vmul.f32 %v324, %v877
    %v880 = vmul.f32 %v324, %v878
    %v881 = vadd.f32 %v875, %v879
    %v882 = vadd.f32 %v876, %v880
    %v883 = vperm.slane %v737, 3
    %v884 = vperm.slane %v738, 3
    %v885 = vmul.f32 %v334, %v883
    %v886 = vmul.f32 %v334, %v884
    %v887 = vadd.f32 %v881, %v885
    %v888 = vadd.f32 %v882, %v886
    %889 = vrot.lane.b32.xlu0 %v737, 127
    %v890 = vpop.permute.xlu0 %889
    %891 = vrot.lane.b32.xlu0 %v738, 127
    %v892 = vpop.permute.xlu0 %891
    %v893 = vsel %vm346, %v890, %v892
    %v894 = vsel %vm346, %v892, %v890
    %v895 = vmul.f32 %v893, %v349
    %v896 = vmul.f32 %v894, %v350
    %v897 = vperm.slane %v895, 0
    %v898 = vperm.slane %v896, 0
    %v899 = vmul.f32 %v355, %v897
    %v900 = vmul.f32 %v355, %v898
    %v901 = vadd.f32 %v887, %v899
    %v902 = vadd.f32 %v888, %v900
    %v903 = vperm.slane %v895, 1
    %v904 = vperm.slane %v896, 1
    %v905 = vmul.f32 %v365, %v903
    %v906 = vmul.f32 %v365, %v904
    %v907 = vadd.f32 %v901, %v905
    %v908 = vadd.f32 %v902, %v906
    %v909 = vperm.slane %v895, 2
    %v910 = vperm.slane %v896, 2
    %v911 = vmul.f32 %v375, %v909
    %v912 = vmul.f32 %v375, %v910
    %v913 = vadd.f32 %v907, %v911
    %v914 = vadd.f32 %v908, %v912
    %v915 = vperm.slane %v895, 3
    %v916 = vperm.slane %v896, 3
    %v917 = vmul.f32 %v385, %v915
    %v918 = vmul.f32 %v385, %v916
    %v919 = vadd.f32 %v913, %v917
    %v920 = vadd.f32 %v914, %v918
    %921 = vrot.lane.b32.xlu0 %v737, 113
    %v922 = vpop.permute.xlu0 %921
    %923 = vrot.lane.b32.xlu0 %v738, 113
    %v924 = vpop.permute.xlu0 %923
    %v925 = vsel %vm397, %v922, %v924
    %v926 = vsel %vm397, %v924, %v922
    %v927 = vmul.f32 %v925, %v400
    %v928 = vmul.f32 %v926, %v401
    %v929 = vperm.slane %v927, 0
    %v930 = vperm.slane %v928, 0
    %v931 = vmul.f32 %v406, %v929
    %v932 = vmul.f32 %v406, %v930
    %v933 = vadd.f32 %v919, %v931
    %v934 = vadd.f32 %v920, %v932
    %v935 = vperm.slane %v927, 1
    %v936 = vperm.slane %v928, 1
    %v937 = vmul.f32 %v416, %v935
    %v938 = vmul.f32 %v416, %v936
    %v939 = vadd.f32 %v933, %v937
    %v940 = vadd.f32 %v934, %v938
    %v941 = vperm.slane %v927, 2
    %v942 = vperm.slane %v928, 2
    %v943 = vmul.f32 %v426, %v941
    %v944 = vmul.f32 %v426, %v942
    %v945 = vadd.f32 %v939, %v943
    %v946 = vadd.f32 %v940, %v944
    %v947 = vperm.slane %v927, 3
    %v948 = vperm.slane %v928, 3
    %v949 = vmul.f32 %v436, %v947
    %v950 = vmul.f32 %v436, %v948
    %v951 = vadd.f32 %v945, %v949
    %v952 = vadd.f32 %v946, %v950
    %953 = vrot.lane.b32.xlu0 %v737, 112
    %v954 = vpop.permute.xlu0 %953
    %955 = vrot.lane.b32.xlu0 %v738, 112
    %v956 = vpop.permute.xlu0 %955
    %v957 = vsel %vm448, %v954, %v956
    %v958 = vsel %vm448, %v956, %v954
    %v959 = vmul.f32 %v957, %v451
    %v960 = vmul.f32 %v958, %v452
    %v961 = vperm.slane %v959, 0
    %v962 = vperm.slane %v960, 0
    %v963 = vmul.f32 %v457, %v961
    %v964 = vmul.f32 %v457, %v962
    %v965 = vadd.f32 %v951, %v963
    %v966 = vadd.f32 %v952, %v964
    %v967 = vperm.slane %v959, 1
    %v968 = vperm.slane %v960, 1
    %v969 = vmul.f32 %v467, %v967
    %v970 = vmul.f32 %v467, %v968
    %v971 = vadd.f32 %v965, %v969
    %v972 = vadd.f32 %v966, %v970
    %v973 = vperm.slane %v959, 2
    %v974 = vperm.slane %v960, 2
    %v975 = vmul.f32 %v477, %v973
    %v976 = vmul.f32 %v477, %v974
    %v977 = vadd.f32 %v971, %v975
    %v978 = vadd.f32 %v972, %v976
    %v979 = vperm.slane %v959, 3
    %v980 = vperm.slane %v960, 3
    %v981 = vmul.f32 %v487, %v979
    %v982 = vmul.f32 %v487, %v980
    %v983 = vadd.f32 %v977, %v981
    %v984 = vadd.f32 %v978, %v982
    %985 = vrot.lane.b32.xlu0 %v737, 111
    %v986 = vpop.permute.xlu0 %985
    %987 = vrot.lane.b32.xlu0 %v738, 111
    %v988 = vpop.permute.xlu0 %987
    %v989 = vsel %vm499, %v986, %v988
    %v990 = vsel %vm499, %v988, %v986
    %v991 = vmul.f32 %v989, %v502
    %v992 = vmul.f32 %v990, %v503
    %v993 = vperm.slane %v991, 0
    %v994 = vperm.slane %v992, 0
    %v995 = vmul.f32 %v508, %v993
    %v996 = vmul.f32 %v508, %v994
    %v997 = vadd.f32 %v983, %v995
    %v998 = vadd.f32 %v984, %v996
    %v999 = vperm.slane %v991, 1
    %v1000 = vperm.slane %v992, 1
    %v1001 = vmul.f32 %v518, %v999
    %v1002 = vmul.f32 %v518, %v1000
    %v1003 = vadd.f32 %v997, %v1001
    %v1004 = vadd.f32 %v998, %v1002
    %v1005 = vperm.slane %v991, 2
    %v1006 = vperm.slane %v992, 2
    %v1007 = vmul.f32 %v528, %v1005
    %v1008 = vmul.f32 %v528, %v1006
    %v1009 = vadd.f32 %v1003, %v1007
    %v1010 = vadd.f32 %v1004, %v1008
    %v1011 = vperm.slane %v991, 3
    %v1012 = vperm.slane %v992, 3
    %v1013 = vmul.f32 %v538, %v1011
    %v1014 = vmul.f32 %v538, %v1012
    %v1015 = vadd.f32 %v1009, %v1013
    %v1016 = vadd.f32 %v1010, %v1014
    %v1017 = vadd.f32 %v1015, %v549
    %v1018 = vadd.f32 %v1016, %v549
    %v1019 = vmax.f32 %v1017, 0.0
    %v1020 = vmax.f32 %v1018, 0.0
    %v1021 = vperm.slane %v1019, 0
    %v1022 = vperm.slane %v1020, 0
    %v1023 = vmul.f32 %v558, %v1021
    %v1024 = vmul.f32 %v558, %v1022
    %v1025 = vmul.f32 %v563, %v1021
    %v1026 = vmul.f32 %v563, %v1022
    %v1027 = vperm.slane %v1019, 1
    %v1028 = vperm.slane %v1020, 1
    %v1029 = vmul.f32 %v573, %v1027
    %v1030 = vmul.f32 %v573, %v1028
    %v1031 = vmul.f32 %v577, %v1027
    %v1032 = vmul.f32 %v577, %v1028
    %v1033 = vadd.f32 %v1023, %v1029
    %v1034 = vadd.f32 %v1024, %v1030
    %v1035 = vadd.f32 %v1025, %v1031
    %v1036 = vadd.f32 %v1026, %v1032
    %v1037 = vperm.slane %v1019, 2
    %v1038 = vperm.slane %v1020, 2
    %v1039 = vmul.f32 %v591, %v1037
    %v1040 = vmul.f32 %v591, %v1038
    %v1041 = vmul.f32 %v595, %v1037
    %v1042 = vmul.f32 %v595, %v1038
    %v1043 = vadd.f32 %v1033, %v1039
    %v1044 = vadd.f32 %v1034, %v1040
    %v1045 = vadd.f32 %v1035, %v1041
    %v1046 = vadd.f32 %v1036, %v1042
    %v1047 = vperm.slane %v1019, 3
    %v1048 = vperm.slane %v1020, 3
    %v1049 = vmul.f32 %v609, %v1047
    %v1050 = vmul.f32 %v609, %v1048
    %v1051 = vmul.f32 %v613, %v1047
    %v1052 = vmul.f32 %v613, %v1048
    %v1053 = vadd.f32 %v1043, %v1049
    %v1054 = vadd.f32 %v1044, %v1050
    %v1055 = vadd.f32 %v1045, %v1051
    %v1056 = vadd.f32 %v1046, %v1052
    %v1057 = vmul.f32 %v628, %v713
    %v1058 = vmul.f32 %v628, %v714
    %v1059 = vmul.f32 %v633, %v713
    %v1060 = vmul.f32 %v633, %v714
    %v1061 = vadd.f32 %v1053, %v1057
    %v1062 = vadd.f32 %v1054, %v1058
    %v1063 = vadd.f32 %v1055, %v1059
    %v1064 = vadd.f32 %v1056, %v1060
    %v1065 = vmul.f32 %v645, %v717
    %v1066 = vmul.f32 %v645, %v718
    %v1067 = vmul.f32 %v649, %v717
    %v1068 = vmul.f32 %v649, %v718
    %v1069 = vadd.f32 %v1061, %v1065
    %v1070 = vadd.f32 %v1062, %v1066
    %v1071 = vadd.f32 %v1063, %v1067
    %v1072 = vadd.f32 %v1064, %v1068
    %v1073 = vmul.f32 %v661, %v723
    %v1074 = vmul.f32 %v661, %v724
    %v1075 = vmul.f32 %v665, %v723
    %v1076 = vmul.f32 %v665, %v724
    %v1077 = vadd.f32 %v1069, %v1073
    %v1078 = vadd.f32 %v1070, %v1074
    %v1079 = vadd.f32 %v1071, %v1075
    %v1080 = vadd.f32 %v1072, %v1076
    %v1081 = vmul.f32 %v677, %v729
    %v1082 = vmul.f32 %v677, %v730
    %v1083 = vmul.f32 %v681, %v729
    %v1084 = vmul.f32 %v681, %v730
    %v1085 = vadd.f32 %v1077, %v1081
    %v1086 = vadd.f32 %v1078, %v1082
    %v1087 = vadd.f32 %v1079, %v1083
    %v1088 = vadd.f32 %v1080, %v1084
    %v1089 = vadd.f32 %v1085, %v694
    %v1090 = vadd.f32 %v1086, %v694
    %v1091 = vadd.f32 %v1087, %v699
    %v1092 = vadd.f32 %v1088, %v699
    %v1093 = vmax.f32 %v1089, 0.0
    %v1094 = vmax.f32 %v1090, 0.0
    %v1095 = vmax.f32 %v1091, 0.0
    %v1096 = vmax.f32 %v1092, 0.0
    %1097 = vst [vmem:[#allocation2 + $0x20] sm:$0xff] %v1093
    %1098 = vst [vmem:[#allocation2 + $0x28] sm:$0xff] %v1094
    %1099 = vst [vmem:[#allocation2 + $0x30] sm:$0xff] %v1095
    %1100 = vst [vmem:[#allocation2 + $0x38] sm:$0xff] %v1096
    // Predicated region
    $region38: #{tpu_custom_call.1} parent=1 // pred_check
      _
    $region39: #{tpu_custom_call.1} parent=1 // pred_check_branch
      %1102 = sbr.rel (0) target = $region41
    $region40: #{tpu_custom_call.1} parent=1 // pred_region
      %1104 = vsyncadd [#allocation3], 0
      %s1105 = sshll.u32 [#allocation2], 4
      %s1106 = int_to_ptr.vmem [resolvable:$true] %s1105
      %s1107 = sshll.u32 %s9, 4
      %s1108 = int_to_ptr.hbm [resolvable:$true] %s1107
      %1113 = dma.vmem_to_hbm [thread:$0]  %s1106, 1024, %s1108, [#allocation3], 256, 256, 16
    $region41: #{tpu_custom_call.1} parent=1 // pred_fallthru
      _
    // Predicated region
    $region42: #{tpu_custom_call.1} parent=1 // pred_check
      _
    $region43: #{tpu_custom_call.1} parent=1 // pred_check_branch
      %1115 = sbr.rel (0) target = $region45
    $region44: #{tpu_custom_call.1} parent=1 // pred_region
      %1117 = dma.done [#allocation3], 1024
    $region45: #{tpu_custom_call.1} parent=1 // pred_fallthru
      _
    %1118 = vsyncpa [#allocation3], 1

</llo_original>
